<compile_context>
chip_gen: v7x
topology: tpu7x:2x2x1
jax: 0.10.0
libtpu: 0.0.40
codegen_flags: <defaults>
</compile_context>

<pallas_src>
import jax
import jax.numpy as jnp
from jax.experimental import pallas as pl
from jax.experimental.pallas import tpu as pltpu  # noqa: F401  (TPU backend import)


def _round_up(x, m):
    return ((x + m - 1) // m) * m


def _pad_to(a, shape):
    return jnp.pad(a, [(0, t - s) for s, t in zip(a.shape, shape)])


# ----------------------------------------------------------------------------
# Fused kernel: GAT layers -> out_proj -> WeightedSumAndMax -> predict MLP
# ----------------------------------------------------------------------------
def _make_fused_kernel(num_gat_layers, num_graphs):
    def kernel(*refs):
        feats_ref, adj_t_ref, member_ref, member_t_ref = refs[:4]
        wv_refs = refs[4:4 + num_gat_layers]
        (wout_ref, bout_ref, aw_w_ref, aw_b_ref,
         w1a_ref, w1b_ref, b1_ref, w2_ref, b2_ref,
         out_ref) = refs[4 + num_gat_layers:]

        f32 = jnp.float32
        adj_t = adj_t_ref[...]                                  # (Np, Np), 0/1
        h = feats_ref[...]                                      # (Np, Din_p)

        # --- GraphTransformer: stacked MultiHeadGATLayers -------------------
        # softmax over the size-1 edge-logit dim is identically 1, so each head
        # is h_dst = sum_{src in N(dst)} value(src) == adj_t @ (h @ Wv); all
        # heads share one fused, lane-dense value projection per layer.
        for wv_ref in wv_refs:
            v = jnp.dot(h, wv_ref[...], preferred_element_type=f32)
            h = jnp.dot(adj_t, v, preferred_element_type=f32)

        # --- out_proj --------------------------------------------------------
        h = jnp.dot(h, wout_ref[...], preferred_element_type=f32) + bout_ref[...]

        # --- WeightedSumAndMax readout ---------------------------------------
        member = member_ref[...]                                # (G, Np), 0/1
        w = jax.nn.sigmoid(
            jnp.dot(h, aw_w_ref[...], preferred_element_type=f32) + aw_b_ref[...])
        h_sum = jnp.dot(member, w * h, preferred_element_type=f32)   # (G, F_p)

        # Per-graph max: small static loop over graphs (no (G, N, F) broadcast).
        member_t = member_t_ref[...]                            # (Np, G)
        max_rows = []
        for g in range(num_graphs):
            col = member_t[:, g:g + 1]                          # (Np, 1)
            row = jnp.max(jnp.where(col > 0.0, h, -1e30), axis=0, keepdims=True)
            valid = (jnp.max(col, keepdims=True) > 0.0).astype(f32)  # empty graph -> 0
            max_rows.append(row * valid)
        h_max = jnp.concatenate(max_rows, axis=0)               # (G, F_p)

        # --- predict MLP: [h_sum | h_max] concat folded into split W1 --------
        p = (jnp.dot(h_sum, w1a_ref[...], preferred_element_type=f32)
             + jnp.dot(h_max, w1b_ref[...], preferred_element_type=f32)
             + b1_ref[...])
        out_ref[...] = jnp.dot(p, w2_ref[...], preferred_element_type=f32) + b2_ref[...]

    return kernel


def graph_transformer_predictor(params, node_feats, adj_t, member):
    """Fused forward pass.  Assumes a binary (0/1) adjacency adj_t[dst, src]."""
    n = node_feats.shape[0]
    g_count = member.shape[0]

    wv_stacks = [wv for (_wq, _wk, wv) in params["gat_layers"]]
    heads, _, hidden = wv_stacks[0].shape
    hh = heads * hidden
    out_dim = params["out_proj_w"].shape[1]
    mlp_hidden = params["p1_w"].shape[1]
    n_tasks = params["p2_w"].shape[1]

    # Pad nodes (sublanes) to x8 and every feature axis (lanes) to x128.
    n_p = _round_up(n, 8)
    din_p = _round_up(node_feats.shape[1], 128)
    hh_p = _round_up(hh, 128)
    dout_p = _round_up(out_dim, 128)
    mh_p = _round_up(mlp_hidden, 128)

    feats_p = _pad_to(node_feats, (n_p, din_p))
    adj_t_p = _pad_to(adj_t, (n_p, n_p))
    member_p = _pad_to(member, (g_count, n_p))
    member_t_p = member_p.T                                     # (Np, G)

    # Fuse per-head value projections into one lane-dense weight per layer.
    # (query/key weights are mathematically dead in the reference -- unused.)
    wv_fused = []
    prev_p = din_p
    for wv in wv_stacks:
        w = wv.transpose(1, 0, 2).reshape(wv.shape[1], hh)      # concat heads on cols
        wv_fused.append(_pad_to(w, (prev_p, hh_p)))
        prev_p = hh_p

    wout = _pad_to(params["out_proj_w"], (hh_p, dout_p))
    bout = _pad_to(params["out_proj_b"].reshape(1, -1), (1, dout_p))
    aw_w = _pad_to(params["aw_w"], (dout_p, 1))
    aw_b = params["aw_b"].reshape(1, 1)

    half = params["p1_w"].shape[0] // 2                         # = readout feat size
    w1a = _pad_to(params["p1_w"][:half], (dout_p, mh_p))        # h_sum branch
    w1b = _pad_to(params["p1_w"][half:], (dout_p, mh_p))        # h_max branch
    b1 = _pad_to(params["p1_b"].reshape(1, -1), (1, mh_p))
    w2 = _pad_to(params["p2_w"], (mh_p, n_tasks))
    b2 = params["p2_b"].reshape(1, -1)

    kernel = _make_fused_kernel(num_gat_layers=len(wv_fused), num_graphs=g_count)
    return pl.pallas_call(
        kernel,
        out_shape=jax.ShapeDtypeStruct((g_count, n_tasks), jnp.float32),
    )(feats_p, adj_t_p, member_p, member_t_p, *wv_fused,
      wout, bout, aw_w, aw_b, w1a, w1b, b1, w2, b2)


# ----------------------------------------------------------------------------
# Parameter init (deterministic, PyTorch-style uniform(+-1/sqrt(fan_in)))
# ----------------------------------------------------------------------------
def _linear_params(key, fan_in, fan_out, bias=True):
    kw, kb = jax.random.split(key)
    bound = 1.0 / float(fan_in) ** 0.5
    w = jax.random.uniform(kw, (fan_in, fan_out), jnp.float32, -bound, bound)
    if not bias:
        return w, None
    b = jax.random.uniform(kb, (fan_out,), jnp.float32, -bound, bound)
    return w, b


def init_params(key, in_dim=50, hidden_dim=100, out_dim=100, n_tasks=1,
                num_layers=2, num_heads=5):
    keys = iter(jax.random.split(key, 256))
    params = {"gat_layers": []}
    layer_in = in_dim
    for _ in range(num_layers):
        # Wq/Wk are kept for parameter parity with the torch module but are
        # never used: the reference's softmax over a size-1 dim makes them dead.
        wq = jnp.stack([_linear_params(next(keys), layer_in, hidden_dim, bias=False)[0]
                        for _ in range(num_heads)])
        wk = jnp.stack([_linear_params(next(keys), layer_in, hidden_dim, bias=False)[0]
                        for _ in range(num_heads)])
        wv = jnp.stack([_linear_params(next(keys), layer_in, hidden_dim, bias=False)[0]
                        for _ in range(num_heads)])
        params["gat_layers"].append((wq, wk, wv))
        layer_in = hidden_dim * num_heads
    params["out_proj_w"], params["out_proj_b"] = _linear_params(
        next(keys), hidden_dim * num_heads, out_dim)
    params["aw_w"], params["aw_b"] = _linear_params(next(keys), hidden_dim, 1)
    params["p1_w"], params["p1_b"] = _linear_params(next(keys), 2 * hidden_dim, 64)
    params["p2_w"], params["p2_b"] = _linear_params(next(keys), 64, n_tasks)
    return params


# ----------------------------------------------------------------------------
# Pure-JAX reference (same math, no Pallas) for a correctness sanity check
# ----------------------------------------------------------------------------
def _reference_forward(params, node_feats, adj_t, member):
    h = node_feats
    for (_wq, _wk, wv) in params["gat_layers"]:
        head_outs = [jnp.dot(adj_t, jnp.dot(h, wv[i])) for i in range(wv.shape[0])]
        h = jnp.concatenate(head_outs, axis=-1)
    h = jnp.dot(h, params["out_proj_w"]) + params["out_proj_b"]
    w = jax.nn.sigmoid(jnp.dot(h, params["aw_w"]) + params["aw_b"])
    h_sum = jnp.dot(member, w * h)
    h_max = jnp.max(jnp.where(member[:, :, None] > 0.0, h[None, :, :], -1e30), axis=1)
    gfeat = jnp.concatenate([h_sum, h_max], axis=-1)
    p = jnp.dot(gfeat, params["p1_w"]) + params["p1_b"]
    return jnp.dot(p, params["p2_w"]) + params["p2_b"]


if __name__ == "__main__":
    key = jax.random.PRNGKey(0)
    k_params, k_feats = jax.random.split(key)

    # Small batched graph: 2 graphs x 5 nodes each = 10 nodes.
    N, G = 10, 2
    in_dim, hidden_dim, out_dim, n_tasks, num_layers, num_heads = 50, 100, 100, 1, 2, 5

    # Edges: within each graph, a directed ring plus self-loops. adj[src, dst].
    adj = jnp.zeros((N, N), jnp.float32)
    for g in range(G):
        base = g * (N // G)
        sz = N // G
        for i in range(sz):
            src = base + i
            dst = base + (i + 1) % sz
            adj = adj.at[src, dst].set(1.0)   # ring edge
            adj = adj.at[src, src].set(1.0)   # self-loop
    adj_t = adj.T                              # adj_t[dst, src]

    member = jnp.zeros((G, N), jnp.float32)
    for g in range(G):
        member = member.at[g, g * (N // G):(g + 1) * (N // G)].set(1.0)

    node_feats = jax.random.normal(k_feats, (N, in_dim), jnp.float32)

    params = init_params(k_params, in_dim=in_dim, hidden_dim=hidden_dim,
                         out_dim=out_dim, n_tasks=n_tasks,
                         num_layers=num_layers, num_heads=num_heads)

    fwd = jax.jit(graph_transformer_predictor)
    out = jax.block_until_ready(fwd(params, node_feats, adj_t, member))

    assert out.shape == (G, n_tasks), out.shape
    assert bool(jnp.all(jnp.isfinite(out)))

    with jax.default_matmul_precision("highest"):
        ref = _reference_forward(params, node_feats, adj_t, member)
    assert bool(jnp.allclose(out, ref, rtol=5e-2, atol=5e-2)), (out, ref)

    print("KERNEL_OK")
</pallas_src>

<mosaic_0001>
module attributes {stable_mosaic.version = 11 : i64} {
  func.func @kernel(%arg0: memref<16x128xf32, #tpu.memory_space<vmem>>, %arg1: memref<16x16xf32, #tpu.memory_space<vmem>>, %arg2: memref<2x16xf32, #tpu.memory_space<vmem>>, %arg3: memref<16x2xf32, #tpu.memory_space<vmem>>, %arg4: memref<128x512xf32, #tpu.memory_space<vmem>>, %arg5: memref<512x512xf32, #tpu.memory_space<vmem>>, %arg6: memref<512x128xf32, #tpu.memory_space<vmem>>, %arg7: memref<1x128xf32, #tpu.memory_space<vmem>>, %arg8: memref<128x1xf32, #tpu.memory_space<vmem>>, %arg9: memref<1x1xf32, #tpu.memory_space<vmem>>, %arg10: memref<128x128xf32, #tpu.memory_space<vmem>>, %arg11: memref<128x128xf32, #tpu.memory_space<vmem>>, %arg12: memref<1x128xf32, #tpu.memory_space<vmem>>, %arg13: memref<128x1xf32, #tpu.memory_space<vmem>>, %arg14: memref<1x1xf32, #tpu.memory_space<vmem>>, %arg15: memref<2x1xf32, #tpu.memory_space<vmem>>) attributes {dimension_semantics = [], scalar_prefetch = 0 : i64, scratch_operands = 0 : i64, tpu.core_type = #tpu.core_type<tc>} {
    %c0 = arith.constant 0 : index
    %c0_0 = arith.constant 0 : index
    %0 = vector.load %arg1[%c0, %c0_0] : memref<16x16xf32, #tpu.memory_space<vmem>>, vector<16x16xf32>
    %c0_1 = arith.constant 0 : index
    %c0_2 = arith.constant 0 : index
    %1 = vector.load %arg0[%c0_1, %c0_2] : memref<16x128xf32, #tpu.memory_space<vmem>>, vector<16x128xf32>
    %c0_3 = arith.constant 0 : index
    %c0_4 = arith.constant 0 : index
    %2 = vector.load %arg4[%c0_3, %c0_4] : memref<128x512xf32, #tpu.memory_space<vmem>>, vector<128x512xf32>
    %cst = arith.constant dense<0.000000e+00> : vector<16x512xf32>
    %3 = tpu.matmul %1, %2, %cst {dimension_numbers = #tpu.dot_dimension_numbers<[1], [0], [0], [1], [0, 0, 1, 1], [], []>} : vector<16x128xf32>, vector<128x512xf32>, vector<16x512xf32> -> vector<16x512xf32>
    %cst_5 = arith.constant dense<0.000000e+00> : vector<16x512xf32>
    %4 = tpu.matmul %0, %3, %cst_5 {dimension_numbers = #tpu.dot_dimension_numbers<[1], [0], [0], [1], [0, 0, 1, 1], [], []>} : vector<16x16xf32>, vector<16x512xf32>, vector<16x512xf32> -> vector<16x512xf32>
    %c0_6 = arith.constant 0 : index
    %c0_7 = arith.constant 0 : index
    %5 = vector.load %arg5[%c0_6, %c0_7] : memref<512x512xf32, #tpu.memory_space<vmem>>, vector<512x512xf32>
    %cst_8 = arith.constant dense<0.000000e+00> : vector<16x512xf32>
    %6 = tpu.matmul %4, %5, %cst_8 {dimension_numbers = #tpu.dot_dimension_numbers<[1], [0], [0], [1], [0, 0, 1, 1], [], []>} : vector<16x512xf32>, vector<512x512xf32>, vector<16x512xf32> -> vector<16x512xf32>
    %cst_9 = arith.constant dense<0.000000e+00> : vector<16x512xf32>
    %7 = tpu.matmul %0, %6, %cst_9 {dimension_numbers = #tpu.dot_dimension_numbers<[1], [0], [0], [1], [0, 0, 1, 1], [], []>} : vector<16x16xf32>, vector<16x512xf32>, vector<16x512xf32> -> vector<16x512xf32>
    %c0_10 = arith.constant 0 : index
    %c0_11 = arith.constant 0 : index
    %8 = vector.load %arg6[%c0_10, %c0_11] : memref<512x128xf32, #tpu.memory_space<vmem>>, vector<512x128xf32>
    %cst_12 = arith.constant dense<0.000000e+00> : vector<16x128xf32>
    %9 = tpu.matmul %7, %8, %cst_12 {dimension_numbers = #tpu.dot_dimension_numbers<[1], [0], [0], [1], [0, 0, 1, 1], [], []>} : vector<16x512xf32>, vector<512x128xf32>, vector<16x128xf32> -> vector<16x128xf32>
    %c0_13 = arith.constant 0 : index
    %c0_14 = arith.constant 0 : index
    %10 = vector.load %arg7[%c0_13, %c0_14] : memref<1x128xf32, #tpu.memory_space<vmem>>, vector<1x128xf32>
    %11 = vector.broadcast %10 : vector<1x128xf32> to vector<16x128xf32>
    %12 = arith.addf %9, %11 : vector<16x128xf32>
    %c0_15 = arith.constant 0 : index
    %c0_16 = arith.constant 0 : index
    %13 = vector.load %arg2[%c0_15, %c0_16] : memref<2x16xf32, #tpu.memory_space<vmem>>, vector<2x16xf32>
    %c0_17 = arith.constant 0 : index
    %c0_18 = arith.constant 0 : index
    %14 = vector.load %arg8[%c0_17, %c0_18] : memref<128x1xf32, #tpu.memory_space<vmem>>, vector<128x1xf32>
    %cst_19 = arith.constant dense<0.000000e+00> : vector<16x1xf32>
    %15 = tpu.matmul %12, %14, %cst_19 {dimension_numbers = #tpu.dot_dimension_numbers<[1], [0], [0], [1], [0, 0, 1, 1], [], []>} : vector<16x128xf32>, vector<128x1xf32>, vector<16x1xf32> -> vector<16x1xf32>
    %c0_20 = arith.constant 0 : index
    %c0_21 = arith.constant 0 : index
    %16 = vector.load %arg9[%c0_20, %c0_21] : memref<1x1xf32, #tpu.memory_space<vmem>>, vector<1x1xf32>
    %17 = vector.broadcast %16 : vector<1x1xf32> to vector<16x1xf32>
    %18 = arith.addf %15, %17 : vector<16x1xf32>
    %19 = arith.negf %18 : vector<16x1xf32>
    %20 = math.exp %19 : vector<16x1xf32>
    %cst_22 = arith.constant 1.000000e+00 : f32
    %21 = vector.broadcast %cst_22 : f32 to vector<16x1xf32>
    %22 = arith.addf %21, %20 : vector<16x1xf32>
    %23 = arith.divf %21, %22 : vector<16x1xf32>
    %24 = vector.broadcast %23 : vector<16x1xf32> to vector<16x128xf32>
    %25 = arith.mulf %24, %12 : vector<16x128xf32>
    %cst_23 = arith.constant dense<0.000000e+00> : vector<2x128xf32>
    %26 = tpu.matmul %13, %25, %cst_23 {dimension_numbers = #tpu.dot_dimension_numbers<[1], [0], [0], [1], [0, 0, 1, 1], [], []>} : vector<2x16xf32>, vector<16x128xf32>, vector<2x128xf32> -> vector<2x128xf32>
    %c0_24 = arith.constant 0 : index
    %c0_25 = arith.constant 0 : index
    %27 = vector.load %arg3[%c0_24, %c0_25] : memref<16x2xf32, #tpu.memory_space<vmem>>, vector<16x2xf32>
    %28 = vector.extract_strided_slice %27 {offsets = [0, 0], sizes = [16, 1], strides = [1, 1]} : vector<16x2xf32> to vector<16x1xf32>
    %cst_26 = arith.constant 0.000000e+00 : f32
    %29 = vector.broadcast %cst_26 : f32 to vector<16x1xf32>
    %30 = arith.cmpf ogt, %28, %29 : vector<16x1xf32>
    %cst_27 = arith.constant -1.000000e+30 : f32
    %31 = vector.shape_cast %30 : vector<16x1xi1> to vector<16x1xi1>
    %32 = vector.broadcast %31 : vector<16x1xi1> to vector<16x128xi1>
    %33 = vector.broadcast %cst_27 : f32 to vector<16x128xf32>
    %34 = arith.select %32, %12, %33 : vector<16x128xi1>, vector<16x128xf32>
    %cst_28 = arith.constant dense<0xFF800000> : vector<128xf32>
    %35 = vector.multi_reduction <maximumf>, %34, %cst_28 [0] : vector<16x128xf32> to vector<128xf32>
    %36 = vector.shape_cast %35 : vector<128xf32> to vector<1x128xf32>
    %37 = vector.shape_cast %28 : vector<16x1xf32> to vector<1x16x1xf32>
    %cst_29 = arith.constant dense<0xFF800000> : vector<1xf32>
    %38 = vector.multi_reduction <maximumf>, %37, %cst_29 [1, 2] : vector<1x16x1xf32> to vector<1xf32>
    %39 = vector.shape_cast %38 : vector<1xf32> to vector<1x1x1xf32>
    %40 = vector.extract %39[0, 0, 0] : f32 from vector<1x1x1xf32>
    %41 = vector.broadcast %40 : f32 to vector<1x1xf32>
    %cst_30 = arith.constant 0.000000e+00 : f32
    %42 = vector.broadcast %cst_30 : f32 to vector<1x1xf32>
    %43 = arith.cmpf ogt, %41, %42 : vector<1x1xf32>
    %44 = arith.extui %43 : vector<1x1xi1> to vector<1x1xi32>
    %45 = arith.sitofp %44 : vector<1x1xi32> to vector<1x1xf32>
    %46 = vector.broadcast %45 : vector<1x1xf32> to vector<1x128xf32>
    %47 = arith.mulf %36, %46 : vector<1x128xf32>
    %48 = vector.extract_strided_slice %27 {offsets = [0, 1], sizes = [16, 1], strides = [1, 1]} : vector<16x2xf32> to vector<16x1xf32>
    %cst_31 = arith.constant 0.000000e+00 : f32
    %49 = vector.broadcast %cst_31 : f32 to vector<16x1xf32>
    %50 = arith.cmpf ogt, %48, %49 : vector<16x1xf32>
    %cst_32 = arith.constant -1.000000e+30 : f32
    %51 = vector.shape_cast %50 : vector<16x1xi1> to vector<16x1xi1>
    %52 = vector.broadcast %51 : vector<16x1xi1> to vector<16x128xi1>
    %53 = vector.broadcast %cst_32 : f32 to vector<16x128xf32>
    %54 = arith.select %52, %12, %53 : vector<16x128xi1>, vector<16x128xf32>
    %cst_33 = arith.constant dense<0xFF800000> : vector<128xf32>
    %55 = vector.multi_reduction <maximumf>, %54, %cst_33 [0] : vector<16x128xf32> to vector<128xf32>
    %56 = vector.shape_cast %55 : vector<128xf32> to vector<1x128xf32>
    %57 = vector.shape_cast %48 : vector<16x1xf32> to vector<1x16x1xf32>
    %cst_34 = arith.constant dense<0xFF800000> : vector<1xf32>
    %58 = vector.multi_reduction <maximumf>, %57, %cst_34 [1, 2] : vector<1x16x1xf32> to vector<1xf32>
    %59 = vector.shape_cast %58 : vector<1xf32> to vector<1x1x1xf32>
    %60 = vector.extract %59[0, 0, 0] : f32 from vector<1x1x1xf32>
    %61 = vector.broadcast %60 : f32 to vector<1x1xf32>
    %cst_35 = arith.constant 0.000000e+00 : f32
    %62 = vector.broadcast %cst_35 : f32 to vector<1x1xf32>
    %63 = arith.cmpf ogt, %61, %62 : vector<1x1xf32>
    %64 = arith.extui %63 : vector<1x1xi1> to vector<1x1xi32>
    %65 = arith.sitofp %64 : vector<1x1xi32> to vector<1x1xf32>
    %66 = vector.broadcast %65 : vector<1x1xf32> to vector<1x128xf32>
    %67 = arith.mulf %56, %66 : vector<1x128xf32>
    %68 = tpu.concatenate %47, %67 in 0 : vector<1x128xf32>, vector<1x128xf32> -> vector<2x128xf32>
    %c0_36 = arith.constant 0 : index
    %c0_37 = arith.constant 0 : index
    %69 = vector.load %arg10[%c0_36, %c0_37] : memref<128x128xf32, #tpu.memory_space<vmem>>, vector<128x128xf32>
    %cst_38 = arith.constant dense<0.000000e+00> : vector<2x128xf32>
    %70 = tpu.matmul %26, %69, %cst_38 {dimension_numbers = #tpu.dot_dimension_numbers<[1], [0], [0], [1], [0, 0, 1, 1], [], []>} : vector<2x128xf32>, vector<128x128xf32>, vector<2x128xf32> -> vector<2x128xf32>
    %c0_39 = arith.constant 0 : index
    %c0_40 = arith.constant 0 : index
    %71 = vector.load %arg11[%c0_39, %c0_40] : memref<128x128xf32, #tpu.memory_space<vmem>>, vector<128x128xf32>
    %cst_41 = arith.constant dense<0.000000e+00> : vector<2x128xf32>
    %72 = tpu.matmul %68, %71, %cst_41 {dimension_numbers = #tpu.dot_dimension_numbers<[1], [0], [0], [1], [0, 0, 1, 1], [], []>} : vector<2x128xf32>, vector<128x128xf32>, vector<2x128xf32> -> vector<2x128xf32>
    %73 = arith.addf %70, %72 : vector<2x128xf32>
    %c0_42 = arith.constant 0 : index
    %c0_43 = arith.constant 0 : index
    %74 = vector.load %arg12[%c0_42, %c0_43] : memref<1x128xf32, #tpu.memory_space<vmem>>, vector<1x128xf32>
    %75 = vector.broadcast %74 : vector<1x128xf32> to vector<2x128xf32>
    %76 = arith.addf %73, %75 : vector<2x128xf32>
    %c0_44 = arith.constant 0 : index
    %c0_45 = arith.constant 0 : index
    %77 = vector.load %arg13[%c0_44, %c0_45] : memref<128x1xf32, #tpu.memory_space<vmem>>, vector<128x1xf32>
    %cst_46 = arith.constant dense<0.000000e+00> : vector<2x1xf32>
    %78 = tpu.matmul %76, %77, %cst_46 {dimension_numbers = #tpu.dot_dimension_numbers<[1], [0], [0], [1], [0, 0, 1, 1], [], []>} : vector<2x128xf32>, vector<128x1xf32>, vector<2x1xf32> -> vector<2x1xf32>
    %c0_47 = arith.constant 0 : index
    %c0_48 = arith.constant 0 : index
    %79 = vector.load %arg14[%c0_47, %c0_48] : memref<1x1xf32, #tpu.memory_space<vmem>>, vector<1x1xf32>
    %80 = vector.broadcast %79 : vector<1x1xf32> to vector<2x1xf32>
    %81 = arith.addf %78, %80 : vector<2x1xf32>
    %c0_49 = arith.constant 0 : index
    %c0_50 = arith.constant 0 : index
    %82 = vector.load %arg15[%c0_49, %c0_50] : memref<2x1xf32, #tpu.memory_space<vmem>>, vector<2x1xf32>
    tpu.vector_store %arg15[%c0_49, %c0_50], %81 {strides = array<i32>} : memref<2x1xf32, #tpu.memory_space<vmem>>, vector<2x1xf32>,
    return
  }
}

</mosaic_0001>

<llo_original>
// kernel: graph_transformer_predictor.1
$region0: #{graph_transformer_predictor.1}
  #allocation0 [shape = 'u32[]', space=smem, size = 0x4, offset = 0x4, fixed_abs, tag = 'smem constant byte address 0x4 - core index']
  #allocation1 [shape = 'u32[144,128]{1,0:T(1,128)}', space=vmem, size = 0x12000, scoped, tag = 'internal scratch']
  #allocation2 [shape = 'f32[1,1]{1,0:T(1,128)S(1)}', space=vmem, size = 0x200, scoped, tag = 'scoped memory for graph_transformer_predictor.1']
  #allocation3 [shape = 'f32[1,1]{1,0:T(1,128)S(1)}', space=vmem, size = 0x200, scoped, tag = 'scoped memory for graph_transformer_predictor.1']
  %s0 = inlined_call_operand.vmem [shape: f32[16,128], index: 0, kind: input, shape index: {}]
  %s1 = inlined_call_operand.vmem [shape: f32[16,16], index: 1, kind: input, shape index: {}]
  %s2 = inlined_call_operand.vmem [shape: f32[2,16], index: 2, kind: input, shape index: {}]
  %s3 = inlined_call_operand.vmem [shape: f32[16,2], index: 3, kind: input, shape index: {}]
  %s4 = inlined_call_operand.vmem [shape: f32[128,512], index: 4, kind: input, shape index: {}]
  %s5 = inlined_call_operand.vmem [shape: f32[512,512], index: 5, kind: input, shape index: {}]
  %s6 = inlined_call_operand.vmem [shape: f32[512,128], index: 6, kind: input, shape index: {}]
  %s7 = inlined_call_operand.vmem [shape: f32[1,128], index: 7, kind: input, shape index: {}]
  %s8 = inlined_call_operand.vmem [shape: f32[128,1], index: 8, kind: input, shape index: {}]
  %s9 = inlined_call_operand.<no memory space> [shape: f32[1,1], index: 9, kind: input, shape index: {}]
  %s10 = inlined_call_operand.vmem [shape: f32[128,128], index: 10, kind: input, shape index: {}]
  %s11 = inlined_call_operand.vmem [shape: f32[128,128], index: 11, kind: input, shape index: {}]
  %s12 = inlined_call_operand.vmem [shape: f32[1,128], index: 12, kind: input, shape index: {}]
  %s13 = inlined_call_operand.vmem [shape: f32[128,1], index: 13, kind: input, shape index: {}]
  %s14 = inlined_call_operand.<no memory space> [shape: f32[1,1], index: 14, kind: input, shape index: {}]
  %s15 = inlined_call_operand.vmem [shape: f32[2,1], index: 15, kind: output, shape index: {}]
  %s16 = sld [smem:[#allocation0]]
  $region70: #{graph_transformer_predictor.1} parent=0
    _
  %s18 = ssub.s32 1, %s16
  %s19 = scalar_select 0, %s18, %s16
  %v20 = vstv %s9
  %21 = vst [vmem:[#allocation2] sm:$0x1] %v20
  %v22 = vstv %s14
  %23 = vst [vmem:[#allocation3] sm:$0x1] %v22
  // Predicated region
  $region2: #{graph_transformer_predictor.1} parent=0 // pred_check
    _
  $region3: #{graph_transformer_predictor.1} parent=0 // pred_check_branch
    %25 = sbr.rel (0) target = $region5
  $region4: #{graph_transformer_predictor.1} parent=0 // pred_region
    _
  $region5: #{graph_transformer_predictor.1} parent=0 // pred_fallthru
    _
  // Predicated region
  $region6: #{graph_transformer_predictor.1} parent=0 // pred_check
    _
  $region7: #{graph_transformer_predictor.1} parent=0 // pred_check_branch
    %27 = sbr.rel (0) target = $region9
  $region8: #{graph_transformer_predictor.1} parent=0 // pred_region
    _
  $region9: #{graph_transformer_predictor.1} parent=0 // pred_fallthru
    _
  // Predicated region
  $region10: #{graph_transformer_predictor.1} parent=0 // pred_check
    _
  $region11: #{graph_transformer_predictor.1} parent=0 // pred_check_branch
    %29 = sbr.rel (0) target = $region13
  $region12: #{graph_transformer_predictor.1} parent=0 // pred_region
    _
  $region13: #{graph_transformer_predictor.1} parent=0 // pred_fallthru
    _
  // Predicated region
  $region14: #{graph_transformer_predictor.1} parent=0 // pred_check
    _
  $region15: #{graph_transformer_predictor.1} parent=0 // pred_check_branch
    %31 = sbr.rel (0) target = $region17
  $region16: #{graph_transformer_predictor.1} parent=0 // pred_region
    _
  $region17: #{graph_transformer_predictor.1} parent=0 // pred_fallthru
    _
  // Predicated region
  $region18: #{graph_transformer_predictor.1} parent=0 // pred_check
    _
  $region19: #{graph_transformer_predictor.1} parent=0 // pred_check_branch
    %33 = sbr.rel (0) target = $region21
  $region20: #{graph_transformer_predictor.1} parent=0 // pred_region
    _
  $region21: #{graph_transformer_predictor.1} parent=0 // pred_fallthru
    _
  // Predicated region
  $region22: #{graph_transformer_predictor.1} parent=0 // pred_check
    _
  $region23: #{graph_transformer_predictor.1} parent=0 // pred_check_branch
    %35 = sbr.rel (0) target = $region25
  $region24: #{graph_transformer_predictor.1} parent=0 // pred_region
    _
  $region25: #{graph_transformer_predictor.1} parent=0 // pred_fallthru
    _
  // Predicated region
  $region26: #{graph_transformer_predictor.1} parent=0 // pred_check
    _
  $region27: #{graph_transformer_predictor.1} parent=0 // pred_check_branch
    %37 = sbr.rel (0) target = $region29
  $region28: #{graph_transformer_predictor.1} parent=0 // pred_region
    _
  $region29: #{graph_transformer_predictor.1} parent=0 // pred_fallthru
    _
  // Predicated region
  $region30: #{graph_transformer_predictor.1} parent=0 // pred_check
    _
  $region31: #{graph_transformer_predictor.1} parent=0 // pred_check_branch
    %39 = sbr.rel (0) target = $region33
  $region32: #{graph_transformer_predictor.1} parent=0 // pred_region
    _
  $region33: #{graph_transformer_predictor.1} parent=0 // pred_fallthru
    _
  // Predicated region
  $region34: #{graph_transformer_predictor.1} parent=0 // pred_check
    _
  $region35: #{graph_transformer_predictor.1} parent=0 // pred_check_branch
    %41 = sbr.rel (0) target = $region37
  $region36: #{graph_transformer_predictor.1} parent=0 // pred_region
    _
  $region37: #{graph_transformer_predictor.1} parent=0 // pred_fallthru
    _
  // Predicated region
  $region38: #{graph_transformer_predictor.1} parent=0 // pred_check
    _
  $region39: #{graph_transformer_predictor.1} parent=0 // pred_check_branch
    %43 = sbr.rel (0) target = $region41
  $region40: #{graph_transformer_predictor.1} parent=0 // pred_region
    _
  $region41: #{graph_transformer_predictor.1} parent=0 // pred_fallthru
    _
  // Predicated region
  $region42: #{graph_transformer_predictor.1} parent=0 // pred_check
    _
  $region43: #{graph_transformer_predictor.1} parent=0 // pred_check_branch
    %45 = sbr.rel (0) target = $region45
  $region44: #{graph_transformer_predictor.1} parent=0 // pred_region
    _
  $region45: #{graph_transformer_predictor.1} parent=0 // pred_fallthru
    _
  // Predicated region
  $region46: #{graph_transformer_predictor.1} parent=0 // pred_check
    _
  $region47: #{graph_transformer_predictor.1} parent=0 // pred_check_branch
    %47 = sbr.rel (0) target = $region49
  $region48: #{graph_transformer_predictor.1} parent=0 // pred_region
    _
  $region49: #{graph_transformer_predictor.1} parent=0 // pred_fallthru
    _
  // Predicated region
  $region50: #{graph_transformer_predictor.1} parent=0 // pred_check
    _
  $region51: #{graph_transformer_predictor.1} parent=0 // pred_check_branch
    %49 = sbr.rel (0) target = $region53
  $region52: #{graph_transformer_predictor.1} parent=0 // pred_region
    _
  $region53: #{graph_transformer_predictor.1} parent=0 // pred_fallthru
    _
  // Predicated region
  $region54: #{graph_transformer_predictor.1} parent=0 // pred_check
    _
  $region55: #{graph_transformer_predictor.1} parent=0 // pred_check_branch
    %51 = sbr.rel (0) target = $region57
  $region56: #{graph_transformer_predictor.1} parent=0 // pred_region
    _
  $region57: #{graph_transformer_predictor.1} parent=0 // pred_fallthru
    _
  // Predicated region
  $region58: #{graph_transformer_predictor.1} parent=0 // pred_check
    _
  $region59: #{graph_transformer_predictor.1} parent=0 // pred_check_branch
    %53 = sbr.rel (0) target = $region61
  $region60: #{graph_transformer_predictor.1} parent=0 // pred_region
    _
  $region61: #{graph_transformer_predictor.1} parent=0 // pred_fallthru
    _
  %v54 = vld [vmem:[%s1] sm:$0xff]
  %v55 = vld [vmem:[%s1 + $0x8] sm:$0xff]
  %v56 = vld [vmem:[%s0] sm:$0xff]
  %v57 = vld [vmem:[%s0 + $0x8] sm:$0xff]
  %v58 = vld [vmem:[%s4] sm:$0xff]
  %v59 = vld [vmem:[%s4 + $0x8] sm:$0xff]
  %v60 = vld [vmem:[%s4 + $0x10] sm:$0xff]
  %v61 = vld [vmem:[%s4 + $0x18] sm:$0xff]
  %v62 = vld [vmem:[%s4 + $0x20] sm:$0xff]
  %v63 = vld [vmem:[%s4 + $0x28] sm:$0xff]
  %v64 = vld [vmem:[%s4 + $0x30] sm:$0xff]
  %v65 = vld [vmem:[%s4 + $0x38] sm:$0xff]
  %v66 = vld [vmem:[%s4 + $0x40] sm:$0xff]
  %v67 = vld [vmem:[%s4 + $0x48] sm:$0xff]
  %v68 = vld [vmem:[%s4 + $0x50] sm:$0xff]
  %v69 = vld [vmem:[%s4 + $0x58] sm:$0xff]
  %v70 = vld [vmem:[%s4 + $0x60] sm:$0xff]
  %v71 = vld [vmem:[%s4 + $0x68] sm:$0xff]
  %v72 = vld [vmem:[%s4 + $0x70] sm:$0xff]
  %v73 = vld [vmem:[%s4 + $0x78] sm:$0xff]
  %v74 = vld [vmem:[%s4 + $0x80] sm:$0xff]
  %v75 = vld [vmem:[%s4 + $0x88] sm:$0xff]
  %v76 = vld [vmem:[%s4 + $0x90] sm:$0xff]
  %v77 = vld [vmem:[%s4 + $0x98] sm:$0xff]
  %v78 = vld [vmem:[%s4 + $0xa0] sm:$0xff]
  %v79 = vld [vmem:[%s4 + $0xa8] sm:$0xff]
  %v80 = vld [vmem:[%s4 + $0xb0] sm:$0xff]
  %v81 = vld [vmem:[%s4 + $0xb8] sm:$0xff]
  %v82 = vld [vmem:[%s4 + $0xc0] sm:$0xff]
  %v83 = vld [vmem:[%s4 + $0xc8] sm:$0xff]
  %v84 = vld [vmem:[%s4 + $0xd0] sm:$0xff]
  %v85 = vld [vmem:[%s4 + $0xd8] sm:$0xff]
  %v86 = vld [vmem:[%s4 + $0xe0] sm:$0xff]
  %v87 = vld [vmem:[%s4 + $0xe8] sm:$0xff]
  %v88 = vld [vmem:[%s4 + $0xf0] sm:$0xff]
  %v89 = vld [vmem:[%s4 + $0xf8] sm:$0xff]
  %v90 = vld [vmem:[%s4 + $0x100] sm:$0xff]
  %v91 = vld [vmem:[%s4 + $0x108] sm:$0xff]
  %v92 = vld [vmem:[%s4 + $0x110] sm:$0xff]
  %v93 = vld [vmem:[%s4 + $0x118] sm:$0xff]
  %v94 = vld [vmem:[%s4 + $0x120] sm:$0xff]
  %v95 = vld [vmem:[%s4 + $0x128] sm:$0xff]
  %v96 = vld [vmem:[%s4 + $0x130] sm:$0xff]
  %v97 = vld [vmem:[%s4 + $0x138] sm:$0xff]
  %v98 = vld [vmem:[%s4 + $0x140] sm:$0xff]
  %v99 = vld [vmem:[%s4 + $0x148] sm:$0xff]
  %v100 = vld [vmem:[%s4 + $0x150] sm:$0xff]
  %v101 = vld [vmem:[%s4 + $0x158] sm:$0xff]
  %v102 = vld [vmem:[%s4 + $0x160] sm:$0xff]
  %v103 = vld [vmem:[%s4 + $0x168] sm:$0xff]
  %v104 = vld [vmem:[%s4 + $0x170] sm:$0xff]
  %v105 = vld [vmem:[%s4 + $0x178] sm:$0xff]
  %v106 = vld [vmem:[%s4 + $0x180] sm:$0xff]
  %v107 = vld [vmem:[%s4 + $0x188] sm:$0xff]
  %v108 = vld [vmem:[%s4 + $0x190] sm:$0xff]
  %v109 = vld [vmem:[%s4 + $0x198] sm:$0xff]
  %v110 = vld [vmem:[%s4 + $0x1a0] sm:$0xff]
  %v111 = vld [vmem:[%s4 + $0x1a8] sm:$0xff]
  %v112 = vld [vmem:[%s4 + $0x1b0] sm:$0xff]
  %v113 = vld [vmem:[%s4 + $0x1b8] sm:$0xff]
  %v114 = vld [vmem:[%s4 + $0x1c0] sm:$0xff]
  %v115 = vld [vmem:[%s4 + $0x1c8] sm:$0xff]
  %v116 = vld [vmem:[%s4 + $0x1d0] sm:$0xff]
  %v117 = vld [vmem:[%s4 + $0x1d8] sm:$0xff]
  %v118 = vld [vmem:[%s4 + $0x1e0] sm:$0xff]
  %v119 = vld [vmem:[%s4 + $0x1e8] sm:$0xff]
  %v120 = vld [vmem:[%s4 + $0x1f0] sm:$0xff]
  %v121 = vld [vmem:[%s4 + $0x1f8] sm:$0xff]
  %122 = vmatprep.subr.mxu0 %v59
  %123 = vmatpush1.msra.mxu0 %v58
  %124 = vmatprep.subr.mxu0 %v63
  %125 = vmatpush1.msra.mxu0 %v62
  %126 = vmatprep.subr.mxu0 %v67
  %127 = vmatpush1.msra.mxu0 %v66
  %128 = vmatprep.subr.mxu0 %v71
  %129 = vmatpush1.msra.mxu0 %v70
  %130 = vmatprep.subr.mxu0 %v75
  %131 = vmatpush1.msra.mxu0 %v74
  %132 = vmatprep.subr.mxu0 %v79
  %133 = vmatpush1.msra.mxu0 %v78
  %134 = vmatprep.subr.mxu0 %v83
  %135 = vmatpush1.msra.mxu0 %v82
  %136 = vmatprep.subr.mxu0 %v87
  %137 = vmatpush1.msra.mxu0 %v86
  %138 = vmatprep.subr.mxu0 %v91
  %139 = vmatpush1.msra.mxu0 %v90
  %140 = vmatprep.subr.mxu0 %v95
  %141 = vmatpush1.msra.mxu0 %v94
  %142 = vmatprep.subr.mxu0 %v99
  %143 = vmatpush1.msra.mxu0 %v98
  %144 = vmatprep.subr.mxu0 %v103
  %145 = vmatpush1.msra.mxu0 %v102
  %146 = vmatprep.subr.mxu0 %v107
  %147 = vmatpush1.msra.mxu0 %v106
  %148 = vmatprep.subr.mxu0 %v111
  %149 = vmatpush1.msra.mxu0 %v110
  %150 = vmatprep.subr.mxu0 %v115
  %151 = vmatpush1.msra.mxu0 %v114
  %152 = vmatprep.subr.mxu0 %v119
  %153 = vmatpush1.msra.mxu0 %v118
  %154 = vmatprep.subr.mxu0 0.0
  %155 = vmatpush1.msra.mxu0 0.0
  %156 = vmatprep.subr.mxu0 0.0
  %157 = vmatpush1.msra.mxu0 0.0
  %158 = vmatprep.subr.mxu0 0.0
  %159 = vmatpush1.msra.mxu0 0.0
  %160 = vmatprep.subr.mxu0 0.0
  %161 = vmatpush1.msra.mxu0 0.0
  %162 = vmatprep.subr.mxu0 0.0
  %163 = vmatpush1.msra.mxu0 0.0
  %164 = vmatprep.subr.mxu0 0.0
  %165 = vmatpush1.msra.mxu0 0.0
  %166 = vmatprep.subr.mxu0 0.0
  %167 = vmatpush1.msra.mxu0 0.0
  %168 = vmatprep.subr.mxu0 0.0
  %169 = vmatpush1.msra.mxu0 0.0
  %170 = vmatprep.subr.mxu0 0.0
  %171 = vmatpush1.msra.mxu0 0.0
  %172 = vmatprep.subr.mxu0 0.0
  %173 = vmatpush1.msra.mxu0 0.0
  %174 = vmatprep.subr.mxu0 0.0
  %175 = vmatpush1.msra.mxu0 0.0
  %176 = vmatprep.subr.mxu0 0.0
  %177 = vmatpush1.msra.mxu0 0.0
  %178 = vmatprep.subr.mxu0 0.0
  %179 = vmatpush1.msra.mxu0 0.0
  %180 = vmatprep.subr.mxu0 0.0
  %181 = vmatpush1.msra.mxu0 0.0
  %182 = vmatprep.subr.mxu0 0.0
  %183 = vmatpush1.msra.mxu0 0.0
  %184 = vmatprep.subr.mxu0 0.0
  %185 = vmatpush1.msra.mxu0 0.0
  %186 = vmatprep.mubr.f32.mxu0 0.0
  %187 = vmatmul.mubr.f32.gmra.mrb[0].mxu0 %v56
  %v188 = vpop.f32.mrb[0].mxu0
  %v189 = vadd.f32 0.0, %v188
  %v190 = vpop.f32.mrb[0].mxu0
  %v191 = vadd.f32 0.0, %v190
  %192 = vmatprep.mubr.f32.mxu0 0.0
  %193 = vmatmul.mubr.f32.gmra.mrb[0].mxu0 %v57
  %v194 = vpop.f32.mrb[0].mxu0
  %v195 = vadd.f32 0.0, %v194
  %v196 = vpop.f32.mrb[0].mxu0
  %v197 = vadd.f32 0.0, %v196
  %198 = vdwg.mxu0
  %199 = vmatprep.subr.mxu0 %v61
  %200 = vmatpush1.msra.mxu0 %v60
  %201 = vmatprep.subr.mxu0 %v65
  %202 = vmatpush1.msra.mxu0 %v64
  %203 = vmatprep.subr.mxu0 %v69
  %204 = vmatpush1.msra.mxu0 %v68
  %205 = vmatprep.subr.mxu0 %v73
  %206 = vmatpush1.msra.mxu0 %v72
  %207 = vmatprep.subr.mxu0 %v77
  %208 = vmatpush1.msra.mxu0 %v76
  %209 = vmatprep.subr.mxu0 %v81
  %210 = vmatpush1.msra.mxu0 %v80
  %211 = vmatprep.subr.mxu0 %v85
  %212 = vmatpush1.msra.mxu0 %v84
  %213 = vmatprep.subr.mxu0 %v89
  %214 = vmatpush1.msra.mxu0 %v88
  %215 = vmatprep.subr.mxu0 %v93
  %216 = vmatpush1.msra.mxu0 %v92
  %217 = vmatprep.subr.mxu0 %v97
  %218 = vmatpush1.msra.mxu0 %v96
  %219 = vmatprep.subr.mxu0 %v101
  %220 = vmatpush1.msra.mxu0 %v100
  %221 = vmatprep.subr.mxu0 %v105
  %222 = vmatpush1.msra.mxu0 %v104
  %223 = vmatprep.subr.mxu0 %v109
  %224 = vmatpush1.msra.mxu0 %v108
  %225 = vmatprep.subr.mxu0 %v113
  %226 = vmatpush1.msra.mxu0 %v112
  %227 = vmatprep.subr.mxu0 %v117
  %228 = vmatpush1.msra.mxu0 %v116
  %229 = vmatprep.subr.mxu0 %v121
  %230 = vmatpush1.msra.mxu0 %v120
  %231 = vmatprep.subr.mxu0 0.0
  %232 = vmatpush1.msra.mxu0 0.0
  %233 = vmatprep.subr.mxu0 0.0
  %234 = vmatpush1.msra.mxu0 0.0
  %235 = vmatprep.subr.mxu0 0.0
  %236 = vmatpush1.msra.mxu0 0.0
  %237 = vmatprep.subr.mxu0 0.0
  %238 = vmatpush1.msra.mxu0 0.0
  %239 = vmatprep.subr.mxu0 0.0
  %240 = vmatpush1.msra.mxu0 0.0
  %241 = vmatprep.subr.mxu0 0.0
  %242 = vmatpush1.msra.mxu0 0.0
  %243 = vmatprep.subr.mxu0 0.0
  %244 = vmatpush1.msra.mxu0 0.0
  %245 = vmatprep.subr.mxu0 0.0
  %246 = vmatpush1.msra.mxu0 0.0
  %247 = vmatprep.subr.mxu0 0.0
  %248 = vmatpush1.msra.mxu0 0.0
  %249 = vmatprep.subr.mxu0 0.0
  %250 = vmatpush1.msra.mxu0 0.0
  %251 = vmatprep.subr.mxu0 0.0
  %252 = vmatpush1.msra.mxu0 0.0
  %253 = vmatprep.subr.mxu0 0.0
  %254 = vmatpush1.msra.mxu0 0.0
  %255 = vmatprep.subr.mxu0 0.0
  %256 = vmatpush1.msra.mxu0 0.0
  %257 = vmatprep.subr.mxu0 0.0
  %258 = vmatpush1.msra.mxu0 0.0
  %259 = vmatprep.subr.mxu0 0.0
  %260 = vmatpush1.msra.mxu0 0.0
  %261 = vmatprep.subr.mxu0 0.0
  %262 = vmatpush1.msra.mxu0 0.0
  %263 = vmatprep.mubr.f32.mxu0 0.0
  %264 = vmatmul.mubr.f32.gmra.mrb[0].mxu0 %v56
  %v265 = vpop.f32.mrb[0].mxu0
  %v266 = vadd.f32 0.0, %v265
  %v267 = vpop.f32.mrb[0].mxu0
  %v268 = vadd.f32 0.0, %v267
  %269 = vmatprep.mubr.f32.mxu0 0.0
  %270 = vmatmul.mubr.f32.gmra.mrb[0].mxu0 %v57
  %v271 = vpop.f32.mrb[0].mxu0
  %v272 = vadd.f32 0.0, %v271
  %v273 = vpop.f32.mrb[0].mxu0
  %v274 = vadd.f32 0.0, %v273
  %275 = vdwg.mxu0
  %vm276 = vcmask 130048
  %v278 = vsel %vm276, %v54, 0
  %v281 = vsel %vm276, %v55, 0
  %283 = vmatprep.subr.mxu0 %v191
  %284 = vmatpush1.msra.mxu0 %v189
  %285 = vmatprep.subr.mxu0 %v197
  %286 = vmatpush1.msra.mxu0 %v195
  %287 = vmatprep.subr.mxu0 0.0
  %288 = vmatpush1.msra.mxu0 0.0
  %289 = vmatprep.subr.mxu0 0.0
  %290 = vmatpush1.msra.mxu0 0.0
  %291 = vmatprep.subr.mxu0 0.0
  %292 = vmatpush1.msra.mxu0 0.0
  %293 = vmatprep.subr.mxu0 0.0
  %294 = vmatpush1.msra.mxu0 0.0
  %295 = vmatprep.subr.mxu0 0.0
  %296 = vmatpush1.msra.mxu0 0.0
  %297 = vmatprep.subr.mxu0 0.0
  %298 = vmatpush1.msra.mxu0 0.0
  %299 = vmatprep.subr.mxu0 0.0
  %300 = vmatpush1.msra.mxu0 0.0
  %301 = vmatprep.subr.mxu0 0.0
  %302 = vmatpush1.msra.mxu0 0.0
  %303 = vmatprep.subr.mxu0 0.0
  %304 = vmatpush1.msra.mxu0 0.0
  %305 = vmatprep.subr.mxu0 0.0
  %306 = vmatpush1.msra.mxu0 0.0
  %307 = vmatprep.subr.mxu0 0.0
  %308 = vmatpush1.msra.mxu0 0.0
  %309 = vmatprep.subr.mxu0 0.0
  %310 = vmatpush1.msra.mxu0 0.0
  %311 = vmatprep.subr.mxu0 0.0
  %312 = vmatpush1.msra.mxu0 0.0
  %313 = vmatprep.subr.mxu0 0.0
  %314 = vmatpush1.msra.mxu0 0.0
  %315 = vmatprep.subr.mxu0 0.0
  %316 = vmatpush1.msra.mxu0 0.0
  %317 = vmatprep.subr.mxu0 0.0
  %318 = vmatpush1.msra.mxu0 0.0
  %319 = vmatprep.subr.mxu0 0.0
  %320 = vmatpush1.msra.mxu0 0.0
  %321 = vmatprep.subr.mxu0 0.0
  %322 = vmatpush1.msra.mxu0 0.0
  %323 = vmatprep.subr.mxu0 0.0
  %324 = vmatpush1.msra.mxu0 0.0
  %325 = vmatprep.subr.mxu0 0.0
  %326 = vmatpush1.msra.mxu0 0.0
  %327 = vmatprep.subr.mxu0 0.0
  %328 = vmatpush1.msra.mxu0 0.0
  %329 = vmatprep.subr.mxu0 0.0
  %330 = vmatpush1.msra.mxu0 0.0
  %331 = vmatprep.subr.mxu0 0.0
  %332 = vmatpush1.msra.mxu0 0.0
  %333 = vmatprep.subr.mxu0 0.0
  %334 = vmatpush1.msra.mxu0 0.0
  %335 = vmatprep.subr.mxu0 0.0
  %336 = vmatpush1.msra.mxu0 0.0
  %337 = vmatprep.subr.mxu0 0.0
  %338 = vmatpush1.msra.mxu0 0.0
  %339 = vmatprep.subr.mxu0 0.0
  %340 = vmatpush1.msra.mxu0 0.0
  %341 = vmatprep.subr.mxu0 0.0
  %342 = vmatpush1.msra.mxu0 0.0
  %343 = vmatprep.subr.mxu0 0.0
  %344 = vmatpush1.msra.mxu0 0.0
  %345 = vmatprep.subr.mxu0 0.0
  %346 = vmatpush1.msra.mxu0 0.0
  %347 = vmatprep.mubr.f32.mxu0 0.0
  %348 = vmatmul.mubr.f32.gmra.mrb[0].mxu0 %v278
  %v349 = vpop.f32.mrb[0].mxu0
  %v350 = vadd.f32 0.0, %v349
  %v351 = vpop.f32.mrb[0].mxu0
  %v352 = vadd.f32 0.0, %v351
  %353 = vmatprep.mubr.f32.mxu0 0.0
  %354 = vmatmul.mubr.f32.gmra.mrb[0].mxu0 %v281
  %v355 = vpop.f32.mrb[0].mxu0
  %v356 = vadd.f32 0.0, %v355
  %v357 = vpop.f32.mrb[0].mxu0
  %v358 = vadd.f32 0.0, %v357
  %359 = vdwg.mxu0
  %360 = vmatprep.subr.mxu0 %v268
  %361 = vmatpush1.msra.mxu0 %v266
  %362 = vmatprep.subr.mxu0 %v274
  %363 = vmatpush1.msra.mxu0 %v272
  %364 = vmatprep.subr.mxu0 0.0
  %365 = vmatpush1.msra.mxu0 0.0
  %366 = vmatprep.subr.mxu0 0.0
  %367 = vmatpush1.msra.mxu0 0.0
  %368 = vmatprep.subr.mxu0 0.0
  %369 = vmatpush1.msra.mxu0 0.0
  %370 = vmatprep.subr.mxu0 0.0
  %371 = vmatpush1.msra.mxu0 0.0
  %372 = vmatprep.subr.mxu0 0.0
  %373 = vmatpush1.msra.mxu0 0.0
  %374 = vmatprep.subr.mxu0 0.0
  %375 = vmatpush1.msra.mxu0 0.0
  %376 = vmatprep.subr.mxu0 0.0
  %377 = vmatpush1.msra.mxu0 0.0
  %378 = vmatprep.subr.mxu0 0.0
  %379 = vmatpush1.msra.mxu0 0.0
  %380 = vmatprep.subr.mxu0 0.0
  %381 = vmatpush1.msra.mxu0 0.0
  %382 = vmatprep.subr.mxu0 0.0
  %383 = vmatpush1.msra.mxu0 0.0
  %384 = vmatprep.subr.mxu0 0.0
  %385 = vmatpush1.msra.mxu0 0.0
  %386 = vmatprep.subr.mxu0 0.0
  %387 = vmatpush1.msra.mxu0 0.0
  %388 = vmatprep.subr.mxu0 0.0
  %389 = vmatpush1.msra.mxu0 0.0
  %390 = vmatprep.subr.mxu0 0.0
  %391 = vmatpush1.msra.mxu0 0.0
  %392 = vmatprep.subr.mxu0 0.0
  %393 = vmatpush1.msra.mxu0 0.0
  %394 = vmatprep.subr.mxu0 0.0
  %395 = vmatpush1.msra.mxu0 0.0
  %396 = vmatprep.subr.mxu0 0.0
  %397 = vmatpush1.msra.mxu0 0.0
  %398 = vmatprep.subr.mxu0 0.0
  %399 = vmatpush1.msra.mxu0 0.0
  %400 = vmatprep.subr.mxu0 0.0
  %401 = vmatpush1.msra.mxu0 0.0
  %402 = vmatprep.subr.mxu0 0.0
  %403 = vmatpush1.msra.mxu0 0.0
  %404 = vmatprep.subr.mxu0 0.0
  %405 = vmatpush1.msra.mxu0 0.0
  %406 = vmatprep.subr.mxu0 0.0
  %407 = vmatpush1.msra.mxu0 0.0
  %408 = vmatprep.subr.mxu0 0.0
  %409 = vmatpush1.msra.mxu0 0.0
  %410 = vmatprep.subr.mxu0 0.0
  %411 = vmatpush1.msra.mxu0 0.0
  %412 = vmatprep.subr.mxu0 0.0
  %413 = vmatpush1.msra.mxu0 0.0
  %414 = vmatprep.subr.mxu0 0.0
  %415 = vmatpush1.msra.mxu0 0.0
  %416 = vmatprep.subr.mxu0 0.0
  %417 = vmatpush1.msra.mxu0 0.0
  %418 = vmatprep.subr.mxu0 0.0
  %419 = vmatpush1.msra.mxu0 0.0
  %420 = vmatprep.subr.mxu0 0.0
  %421 = vmatpush1.msra.mxu0 0.0
  %422 = vmatprep.subr.mxu0 0.0
  %423 = vmatpush1.msra.mxu0 0.0
  %424 = vmatprep.mubr.f32.mxu0 0.0
  %425 = vmatmul.mubr.f32.gmra.mrb[0].mxu0 %v278
  %v426 = vpop.f32.mrb[0].mxu0
  %v427 = vadd.f32 0.0, %v426
  %v428 = vpop.f32.mrb[0].mxu0
  %v429 = vadd.f32 0.0, %v428
  %430 = vmatprep.mubr.f32.mxu0 0.0
  %431 = vmatmul.mubr.f32.gmra.mrb[0].mxu0 %v281
  %v432 = vpop.f32.mrb[0].mxu0
  %v433 = vadd.f32 0.0, %v432
  %v434 = vpop.f32.mrb[0].mxu0
  %v435 = vadd.f32 0.0, %v434
  %436 = vdwg.mxu0
  %v437 = vld [vmem:[%s5] sm:$0xff]
  %v438 = vld [vmem:[%s5 + $0x8] sm:$0xff]
  %v439 = vld [vmem:[%s5 + $0x10] sm:$0xff]
  %v440 = vld [vmem:[%s5 + $0x18] sm:$0xff]
  %v441 = vld [vmem:[%s5 + $0x20] sm:$0xff]
  %v442 = vld [vmem:[%s5 + $0x28] sm:$0xff]
  %v443 = vld [vmem:[%s5 + $0x30] sm:$0xff]
  %v444 = vld [vmem:[%s5 + $0x38] sm:$0xff]
  %v445 = vld [vmem:[%s5 + $0x40] sm:$0xff]
  %v446 = vld [vmem:[%s5 + $0x48] sm:$0xff]
  %v447 = vld [vmem:[%s5 + $0x50] sm:$0xff]
  %v448 = vld [vmem:[%s5 + $0x58] sm:$0xff]
  %v449 = vld [vmem:[%s5 + $0x60] sm:$0xff]
  %v450 = vld [vmem:[%s5 + $0x68] sm:$0xff]
  %v451 = vld [vmem:[%s5 + $0x70] sm:$0xff]
  %v452 = vld [vmem:[%s5 + $0x78] sm:$0xff]
  %v453 = vld [vmem:[%s5 + $0x80] sm:$0xff]
  %v454 = vld [vmem:[%s5 + $0x88] sm:$0xff]
  %v455 = vld [vmem:[%s5 + $0x90] sm:$0xff]
  %v456 = vld [vmem:[%s5 + $0x98] sm:$0xff]
  %v457 = vld [vmem:[%s5 + $0xa0] sm:$0xff]
  %v458 = vld [vmem:[%s5 + $0xa8] sm:$0xff]
  %v459 = vld [vmem:[%s5 + $0xb0] sm:$0xff]
  %v460 = vld [vmem:[%s5 + $0xb8] sm:$0xff]
  %v461 = vld [vmem:[%s5 + $0xc0] sm:$0xff]
  %v462 = vld [vmem:[%s5 + $0xc8] sm:$0xff]
  %v463 = vld [vmem:[%s5 + $0xd0] sm:$0xff]
  %v464 = vld [vmem:[%s5 + $0xd8] sm:$0xff]
  %v465 = vld [vmem:[%s5 + $0xe0] sm:$0xff]
  %v466 = vld [vmem:[%s5 + $0xe8] sm:$0xff]
  %v467 = vld [vmem:[%s5 + $0xf0] sm:$0xff]
  %v468 = vld [vmem:[%s5 + $0xf8] sm:$0xff]
  %v469 = vld [vmem:[%s5 + $0x100] sm:$0xff]
  %v470 = vld [vmem:[%s5 + $0x108] sm:$0xff]
  %v471 = vld [vmem:[%s5 + $0x110] sm:$0xff]
  %v472 = vld [vmem:[%s5 + $0x118] sm:$0xff]
  %v473 = vld [vmem:[%s5 + $0x120] sm:$0xff]
  %v474 = vld [vmem:[%s5 + $0x128] sm:$0xff]
  %v475 = vld [vmem:[%s5 + $0x130] sm:$0xff]
  %v476 = vld [vmem:[%s5 + $0x138] sm:$0xff]
  %v477 = vld [vmem:[%s5 + $0x140] sm:$0xff]
  %v478 = vld [vmem:[%s5 + $0x148] sm:$0xff]
  %v479 = vld [vmem:[%s5 + $0x150] sm:$0xff]
  %v480 = vld [vmem:[%s5 + $0x158] sm:$0xff]
  %v481 = vld [vmem:[%s5 + $0x160] sm:$0xff]
  %v482 = vld [vmem:[%s5 + $0x168] sm:$0xff]
  %v483 = vld [vmem:[%s5 + $0x170] sm:$0xff]
  %v484 = vld [vmem:[%s5 + $0x178] sm:$0xff]
  %v485 = vld [vmem:[%s5 + $0x180] sm:$0xff]
  %v486 = vld [vmem:[%s5 + $0x188] sm:$0xff]
  %v487 = vld [vmem:[%s5 + $0x190] sm:$0xff]
  %v488 = vld [vmem:[%s5 + $0x198] sm:$0xff]
  %v489 = vld [vmem:[%s5 + $0x1a0] sm:$0xff]
  %v490 = vld [vmem:[%s5 + $0x1a8] sm:$0xff]
  %v491 = vld [vmem:[%s5 + $0x1b0] sm:$0xff]
  %v492 = vld [vmem:[%s5 + $0x1b8] sm:$0xff]
  %v493 = vld [vmem:[%s5 + $0x1c0] sm:$0xff]
  %v494 = vld [vmem:[%s5 + $0x1c8] sm:$0xff]
  %v495 = vld [vmem:[%s5 + $0x1d0] sm:$0xff]
  %v496 = vld [vmem:[%s5 + $0x1d8] sm:$0xff]
  %v497 = vld [vmem:[%s5 + $0x1e0] sm:$0xff]
  %v498 = vld [vmem:[%s5 + $0x1e8] sm:$0xff]
  %v499 = vld [vmem:[%s5 + $0x1f0] sm:$0xff]
  %v500 = vld [vmem:[%s5 + $0x1f8] sm:$0xff]
  %v501 = vld [vmem:[%s5 + $0x200] sm:$0xff]
  %v502 = vld [vmem:[%s5 + $0x208] sm:$0xff]
  %v503 = vld [vmem:[%s5 + $0x210] sm:$0xff]
  %v504 = vld [vmem:[%s5 + $0x218] sm:$0xff]
  %v505 = vld [vmem:[%s5 + $0x220] sm:$0xff]
  %v506 = vld [vmem:[%s5 + $0x228] sm:$0xff]
  %v507 = vld [vmem:[%s5 + $0x230] sm:$0xff]
  %v508 = vld [vmem:[%s5 + $0x238] sm:$0xff]
  %v509 = vld [vmem:[%s5 + $0x240] sm:$0xff]
  %v510 = vld [vmem:[%s5 + $0x248] sm:$0xff]
  %v511 = vld [vmem:[%s5 + $0x250] sm:$0xff]
  %v512 = vld [vmem:[%s5 + $0x258] sm:$0xff]
  %v513 = vld [vmem:[%s5 + $0x260] sm:$0xff]
  %v514 = vld [vmem:[%s5 + $0x268] sm:$0xff]
  %v515 = vld [vmem:[%s5 + $0x270] sm:$0xff]
  %v516 = vld [vmem:[%s5 + $0x278] sm:$0xff]
  %v517 = vld [vmem:[%s5 + $0x280] sm:$0xff]
  %v518 = vld [vmem:[%s5 + $0x288] sm:$0xff]
  %v519 = vld [vmem:[%s5 + $0x290] sm:$0xff]
  %v520 = vld [vmem:[%s5 + $0x298] sm:$0xff]
  %v521 = vld [vmem:[%s5 + $0x2a0] sm:$0xff]
  %v522 = vld [vmem:[%s5 + $0x2a8] sm:$0xff]
  %v523 = vld [vmem:[%s5 + $0x2b0] sm:$0xff]
  %v524 = vld [vmem:[%s5 + $0x2b8] sm:$0xff]
  %v525 = vld [vmem:[%s5 + $0x2c0] sm:$0xff]
  %v526 = vld [vmem:[%s5 + $0x2c8] sm:$0xff]
  %v527 = vld [vmem:[%s5 + $0x2d0] sm:$0xff]
  %v528 = vld [vmem:[%s5 + $0x2d8] sm:$0xff]
  %v529 = vld [vmem:[%s5 + $0x2e0] sm:$0xff]
  %v530 = vld [vmem:[%s5 + $0x2e8] sm:$0xff]
  %v531 = vld [vmem:[%s5 + $0x2f0] sm:$0xff]
  %v532 = vld [vmem:[%s5 + $0x2f8] sm:$0xff]
  %v533 = vld [vmem:[%s5 + $0x300] sm:$0xff]
  %v534 = vld [vmem:[%s5 + $0x308] sm:$0xff]
  %v535 = vld [vmem:[%s5 + $0x310] sm:$0xff]
  %v536 = vld [vmem:[%s5 + $0x318] sm:$0xff]
  %v537 = vld [vmem:[%s5 + $0x320] sm:$0xff]
  %v538 = vld [vmem:[%s5 + $0x328] sm:$0xff]
  %v539 = vld [vmem:[%s5 + $0x330] sm:$0xff]
  %v540 = vld [vmem:[%s5 + $0x338] sm:$0xff]
  %v541 = vld [vmem:[%s5 + $0x340] sm:$0xff]
  %v542 = vld [vmem:[%s5 + $0x348] sm:$0xff]
  %v543 = vld [vmem:[%s5 + $0x350] sm:$0xff]
  %v544 = vld [vmem:[%s5 + $0x358] sm:$0xff]
  %v545 = vld [vmem:[%s5 + $0x360] sm:$0xff]
  %v546 = vld [vmem:[%s5 + $0x368] sm:$0xff]
  %v547 = vld [vmem:[%s5 + $0x370] sm:$0xff]
  %v548 = vld [vmem:[%s5 + $0x378] sm:$0xff]
  %v549 = vld [vmem:[%s5 + $0x380] sm:$0xff]
  %v550 = vld [vmem:[%s5 + $0x388] sm:$0xff]
  %v551 = vld [vmem:[%s5 + $0x390] sm:$0xff]
  %v552 = vld [vmem:[%s5 + $0x398] sm:$0xff]
  %v553 = vld [vmem:[%s5 + $0x3a0] sm:$0xff]
  %v554 = vld [vmem:[%s5 + $0x3a8] sm:$0xff]
  %v555 = vld [vmem:[%s5 + $0x3b0] sm:$0xff]
  %v556 = vld [vmem:[%s5 + $0x3b8] sm:$0xff]
  %v557 = vld [vmem:[%s5 + $0x3c0] sm:$0xff]
  %v558 = vld [vmem:[%s5 + $0x3c8] sm:$0xff]
  %v559 = vld [vmem:[%s5 + $0x3d0] sm:$0xff]
  %v560 = vld [vmem:[%s5 + $0x3d8] sm:$0xff]
  %v561 = vld [vmem:[%s5 + $0x3e0] sm:$0xff]
  %v562 = vld [vmem:[%s5 + $0x3e8] sm:$0xff]
  %v563 = vld [vmem:[%s5 + $0x3f0] sm:$0xff]
  %v564 = vld [vmem:[%s5 + $0x3f8] sm:$0xff]
  %v565 = vld [vmem:[%s5 + $0x400] sm:$0xff]
  %v566 = vld [vmem:[%s5 + $0x408] sm:$0xff]
  %v567 = vld [vmem:[%s5 + $0x410] sm:$0xff]
  %v568 = vld [vmem:[%s5 + $0x418] sm:$0xff]
  %v569 = vld [vmem:[%s5 + $0x420] sm:$0xff]
  %v570 = vld [vmem:[%s5 + $0x428] sm:$0xff]
  %v571 = vld [vmem:[%s5 + $0x430] sm:$0xff]
  %v572 = vld [vmem:[%s5 + $0x438] sm:$0xff]
  %v573 = vld [vmem:[%s5 + $0x440] sm:$0xff]
  %v574 = vld [vmem:[%s5 + $0x448] sm:$0xff]
  %v575 = vld [vmem:[%s5 + $0x450] sm:$0xff]
  %v576 = vld [vmem:[%s5 + $0x458] sm:$0xff]
  %v577 = vld [vmem:[%s5 + $0x460] sm:$0xff]
  %v578 = vld [vmem:[%s5 + $0x468] sm:$0xff]
  %v579 = vld [vmem:[%s5 + $0x470] sm:$0xff]
  %v580 = vld [vmem:[%s5 + $0x478] sm:$0xff]
  %v581 = vld [vmem:[%s5 + $0x480] sm:$0xff]
  %v582 = vld [vmem:[%s5 + $0x488] sm:$0xff]
  %v583 = vld [vmem:[%s5 + $0x490] sm:$0xff]
  %v584 = vld [vmem:[%s5 + $0x498] sm:$0xff]
  %v585 = vld [vmem:[%s5 + $0x4a0] sm:$0xff]
  %v586 = vld [vmem:[%s5 + $0x4a8] sm:$0xff]
  %v587 = vld [vmem:[%s5 + $0x4b0] sm:$0xff]
  %v588 = vld [vmem:[%s5 + $0x4b8] sm:$0xff]
  %v589 = vld [vmem:[%s5 + $0x4c0] sm:$0xff]
  %v590 = vld [vmem:[%s5 + $0x4c8] sm:$0xff]
  %v591 = vld [vmem:[%s5 + $0x4d0] sm:$0xff]
  %v592 = vld [vmem:[%s5 + $0x4d8] sm:$0xff]
  %v593 = vld [vmem:[%s5 + $0x4e0] sm:$0xff]
  %v594 = vld [vmem:[%s5 + $0x4e8] sm:$0xff]
  %v595 = vld [vmem:[%s5 + $0x4f0] sm:$0xff]
  %v596 = vld [vmem:[%s5 + $0x4f8] sm:$0xff]
  %v597 = vld [vmem:[%s5 + $0x500] sm:$0xff]
  %v598 = vld [vmem:[%s5 + $0x508] sm:$0xff]
  %v599 = vld [vmem:[%s5 + $0x510] sm:$0xff]
  %v600 = vld [vmem:[%s5 + $0x518] sm:$0xff]
  %v601 = vld [vmem:[%s5 + $0x520] sm:$0xff]
  %v602 = vld [vmem:[%s5 + $0x528] sm:$0xff]
  %v603 = vld [vmem:[%s5 + $0x530] sm:$0xff]
  %v604 = vld [vmem:[%s5 + $0x538] sm:$0xff]
  %v605 = vld [vmem:[%s5 + $0x540] sm:$0xff]
  %v606 = vld [vmem:[%s5 + $0x548] sm:$0xff]
  %v607 = vld [vmem:[%s5 + $0x550] sm:$0xff]
  %v608 = vld [vmem:[%s5 + $0x558] sm:$0xff]
  %v609 = vld [vmem:[%s5 + $0x560] sm:$0xff]
  %v610 = vld [vmem:[%s5 + $0x568] sm:$0xff]
  %v611 = vld [vmem:[%s5 + $0x570] sm:$0xff]
  %v612 = vld [vmem:[%s5 + $0x578] sm:$0xff]
  %v613 = vld [vmem:[%s5 + $0x580] sm:$0xff]
  %v614 = vld [vmem:[%s5 + $0x588] sm:$0xff]
  %v615 = vld [vmem:[%s5 + $0x590] sm:$0xff]
  %v616 = vld [vmem:[%s5 + $0x598] sm:$0xff]
  %v617 = vld [vmem:[%s5 + $0x5a0] sm:$0xff]
  %v618 = vld [vmem:[%s5 + $0x5a8] sm:$0xff]
  %v619 = vld [vmem:[%s5 + $0x5b0] sm:$0xff]
  %v620 = vld [vmem:[%s5 + $0x5b8] sm:$0xff]
  %v621 = vld [vmem:[%s5 + $0x5c0] sm:$0xff]
  %v622 = vld [vmem:[%s5 + $0x5c8] sm:$0xff]
  %v623 = vld [vmem:[%s5 + $0x5d0] sm:$0xff]
  %v624 = vld [vmem:[%s5 + $0x5d8] sm:$0xff]
  %v625 = vld [vmem:[%s5 + $0x5e0] sm:$0xff]
  %v626 = vld [vmem:[%s5 + $0x5e8] sm:$0xff]
  %v627 = vld [vmem:[%s5 + $0x5f0] sm:$0xff]
  %v628 = vld [vmem:[%s5 + $0x5f8] sm:$0xff]
  %v629 = vld [vmem:[%s5 + $0x600] sm:$0xff]
  %v630 = vld [vmem:[%s5 + $0x608] sm:$0xff]
  %v631 = vld [vmem:[%s5 + $0x610] sm:$0xff]
  %v632 = vld [vmem:[%s5 + $0x618] sm:$0xff]
  %v633 = vld [vmem:[%s5 + $0x620] sm:$0xff]
  %v634 = vld [vmem:[%s5 + $0x628] sm:$0xff]
  %v635 = vld [vmem:[%s5 + $0x630] sm:$0xff]
  %v636 = vld [vmem:[%s5 + $0x638] sm:$0xff]
  %v637 = vld [vmem:[%s5 + $0x640] sm:$0xff]
  %v638 = vld [vmem:[%s5 + $0x648] sm:$0xff]
  %v639 = vld [vmem:[%s5 + $0x650] sm:$0xff]
  %v640 = vld [vmem:[%s5 + $0x658] sm:$0xff]
  %v641 = vld [vmem:[%s5 + $0x660] sm:$0xff]
  %v642 = vld [vmem:[%s5 + $0x668] sm:$0xff]
  %v643 = vld [vmem:[%s5 + $0x670] sm:$0xff]
  %v644 = vld [vmem:[%s5 + $0x678] sm:$0xff]
  %v645 = vld [vmem:[%s5 + $0x680] sm:$0xff]
  %v646 = vld [vmem:[%s5 + $0x688] sm:$0xff]
  %v647 = vld [vmem:[%s5 + $0x690] sm:$0xff]
  %v648 = vld [vmem:[%s5 + $0x698] sm:$0xff]
  %v649 = vld [vmem:[%s5 + $0x6a0] sm:$0xff]
  %v650 = vld [vmem:[%s5 + $0x6a8] sm:$0xff]
  %v651 = vld [vmem:[%s5 + $0x6b0] sm:$0xff]
  %v652 = vld [vmem:[%s5 + $0x6b8] sm:$0xff]
  %v653 = vld [vmem:[%s5 + $0x6c0] sm:$0xff]
  %v654 = vld [vmem:[%s5 + $0x6c8] sm:$0xff]
  %v655 = vld [vmem:[%s5 + $0x6d0] sm:$0xff]
  %v656 = vld [vmem:[%s5 + $0x6d8] sm:$0xff]
  %v657 = vld [vmem:[%s5 + $0x6e0] sm:$0xff]
  %v658 = vld [vmem:[%s5 + $0x6e8] sm:$0xff]
  %v659 = vld [vmem:[%s5 + $0x6f0] sm:$0xff]
  %v660 = vld [vmem:[%s5 + $0x6f8] sm:$0xff]
  %v661 = vld [vmem:[%s5 + $0x700] sm:$0xff]
  %v662 = vld [vmem:[%s5 + $0x708] sm:$0xff]
  %v663 = vld [vmem:[%s5 + $0x710] sm:$0xff]
  %v664 = vld [vmem:[%s5 + $0x718] sm:$0xff]
  %v665 = vld [vmem:[%s5 + $0x720] sm:$0xff]
  %v666 = vld [vmem:[%s5 + $0x728] sm:$0xff]
  %v667 = vld [vmem:[%s5 + $0x730] sm:$0xff]
  %v668 = vld [vmem:[%s5 + $0x738] sm:$0xff]
  %v669 = vld [vmem:[%s5 + $0x740] sm:$0xff]
  %v670 = vld [vmem:[%s5 + $0x748] sm:$0xff]
  %v671 = vld [vmem:[%s5 + $0x750] sm:$0xff]
  %v672 = vld [vmem:[%s5 + $0x758] sm:$0xff]
  %v673 = vld [vmem:[%s5 + $0x760] sm:$0xff]
  %v674 = vld [vmem:[%s5 + $0x768] sm:$0xff]
  %v675 = vld [vmem:[%s5 + $0x770] sm:$0xff]
  %v676 = vld [vmem:[%s5 + $0x778] sm:$0xff]
  %v677 = vld [vmem:[%s5 + $0x780] sm:$0xff]
  %v678 = vld [vmem:[%s5 + $0x788] sm:$0xff]
  %v679 = vld [vmem:[%s5 + $0x790] sm:$0xff]
  %v680 = vld [vmem:[%s5 + $0x798] sm:$0xff]
  %v681 = vld [vmem:[%s5 + $0x7a0] sm:$0xff]
  %v682 = vld [vmem:[%s5 + $0x7a8] sm:$0xff]
  %v683 = vld [vmem:[%s5 + $0x7b0] sm:$0xff]
  %v684 = vld [vmem:[%s5 + $0x7b8] sm:$0xff]
  %v685 = vld [vmem:[%s5 + $0x7c0] sm:$0xff]
  %v686 = vld [vmem:[%s5 + $0x7c8] sm:$0xff]
  %v687 = vld [vmem:[%s5 + $0x7d0] sm:$0xff]
  %v688 = vld [vmem:[%s5 + $0x7d8] sm:$0xff]
  %v689 = vld [vmem:[%s5 + $0x7e0] sm:$0xff]
  %v690 = vld [vmem:[%s5 + $0x7e8] sm:$0xff]
  %v691 = vld [vmem:[%s5 + $0x7f0] sm:$0xff]
  %v692 = vld [vmem:[%s5 + $0x7f8] sm:$0xff]
  %693 = vmatprep.subr.mxu0 %v438
  %694 = vmatpush1.msra.mxu0 %v437
  %695 = vmatprep.subr.mxu0 %v442
  %696 = vmatpush1.msra.mxu0 %v441
  %697 = vmatprep.subr.mxu0 %v446
  %698 = vmatpush1.msra.mxu0 %v445
  %699 = vmatprep.subr.mxu0 %v450
  %700 = vmatpush1.msra.mxu0 %v449
  %701 = vmatprep.subr.mxu0 %v454
  %702 = vmatpush1.msra.mxu0 %v453
  %703 = vmatprep.subr.mxu0 %v458
  %704 = vmatpush1.msra.mxu0 %v457
  %705 = vmatprep.subr.mxu0 %v462
  %706 = vmatpush1.msra.mxu0 %v461
  %707 = vmatprep.subr.mxu0 %v466
  %708 = vmatpush1.msra.mxu0 %v465
  %709 = vmatprep.subr.mxu0 %v470
  %710 = vmatpush1.msra.mxu0 %v469
  %711 = vmatprep.subr.mxu0 %v474
  %712 = vmatpush1.msra.mxu0 %v473
  %713 = vmatprep.subr.mxu0 %v478
  %714 = vmatpush1.msra.mxu0 %v477
  %715 = vmatprep.subr.mxu0 %v482
  %716 = vmatpush1.msra.mxu0 %v481
  %717 = vmatprep.subr.mxu0 %v486
  %718 = vmatpush1.msra.mxu0 %v485
  %719 = vmatprep.subr.mxu0 %v490
  %720 = vmatpush1.msra.mxu0 %v489
  %721 = vmatprep.subr.mxu0 %v494
  %722 = vmatpush1.msra.mxu0 %v493
  %723 = vmatprep.subr.mxu0 %v498
  %724 = vmatpush1.msra.mxu0 %v497
  %725 = vmatprep.subr.mxu0 %v502
  %726 = vmatpush1.msra.mxu0 %v501
  %727 = vmatprep.subr.mxu0 %v506
  %728 = vmatpush1.msra.mxu0 %v505
  %729 = vmatprep.subr.mxu0 %v510
  %730 = vmatpush1.msra.mxu0 %v509
  %731 = vmatprep.subr.mxu0 %v514
  %732 = vmatpush1.msra.mxu0 %v513
  %733 = vmatprep.subr.mxu0 %v518
  %734 = vmatpush1.msra.mxu0 %v517
  %735 = vmatprep.subr.mxu0 %v522
  %736 = vmatpush1.msra.mxu0 %v521
  %737 = vmatprep.subr.mxu0 %v526
  %738 = vmatpush1.msra.mxu0 %v525
  %739 = vmatprep.subr.mxu0 %v530
  %740 = vmatpush1.msra.mxu0 %v529
  %741 = vmatprep.subr.mxu0 %v534
  %742 = vmatpush1.msra.mxu0 %v533
  %743 = vmatprep.subr.mxu0 %v538
  %744 = vmatpush1.msra.mxu0 %v537
  %745 = vmatprep.subr.mxu0 %v542
  %746 = vmatpush1.msra.mxu0 %v541
  %747 = vmatprep.subr.mxu0 %v546
  %748 = vmatpush1.msra.mxu0 %v545
  %749 = vmatprep.subr.mxu0 %v550
  %750 = vmatpush1.msra.mxu0 %v549
  %751 = vmatprep.subr.mxu0 %v554
  %752 = vmatpush1.msra.mxu0 %v553
  %753 = vmatprep.subr.mxu0 %v558
  %754 = vmatpush1.msra.mxu0 %v557
  %755 = vmatprep.subr.mxu0 %v562
  %756 = vmatpush1.msra.mxu0 %v561
  %757 = vmatprep.mubr.f32.mxu0 %v352
  %758 = vmatmul.mubr.f32.gmra.mrb[0].mxu0 %v350
  %v759 = vpop.f32.mrb[0].mxu0
  %v760 = vadd.f32 0.0, %v759
  %v761 = vpop.f32.mrb[0].mxu0
  %v762 = vadd.f32 0.0, %v761
  %763 = vmatprep.mubr.f32.mxu0 %v358
  %764 = vmatmul.mubr.f32.gmra.mrb[0].mxu0 %v356
  %v765 = vpop.f32.mrb[0].mxu0
  %v766 = vadd.f32 0.0, %v765
  %v767 = vpop.f32.mrb[0].mxu0
  %v768 = vadd.f32 0.0, %v767
  %769 = vdwg.mxu0
  %770 = vmatprep.subr.mxu0 %v566
  %771 = vmatpush1.msra.mxu0 %v565
  %772 = vmatprep.subr.mxu0 %v570
  %773 = vmatpush1.msra.mxu0 %v569
  %774 = vmatprep.subr.mxu0 %v574
  %775 = vmatpush1.msra.mxu0 %v573
  %776 = vmatprep.subr.mxu0 %v578
  %777 = vmatpush1.msra.mxu0 %v577
  %778 = vmatprep.subr.mxu0 %v582
  %779 = vmatpush1.msra.mxu0 %v581
  %780 = vmatprep.subr.mxu0 %v586
  %781 = vmatpush1.msra.mxu0 %v585
  %782 = vmatprep.subr.mxu0 %v590
  %783 = vmatpush1.msra.mxu0 %v589
  %784 = vmatprep.subr.mxu0 %v594
  %785 = vmatpush1.msra.mxu0 %v593
  %786 = vmatprep.subr.mxu0 %v598
  %787 = vmatpush1.msra.mxu0 %v597
  %788 = vmatprep.subr.mxu0 %v602
  %789 = vmatpush1.msra.mxu0 %v601
  %790 = vmatprep.subr.mxu0 %v606
  %791 = vmatpush1.msra.mxu0 %v605
  %792 = vmatprep.subr.mxu0 %v610
  %793 = vmatpush1.msra.mxu0 %v609
  %794 = vmatprep.subr.mxu0 %v614
  %795 = vmatpush1.msra.mxu0 %v613
  %796 = vmatprep.subr.mxu0 %v618
  %797 = vmatpush1.msra.mxu0 %v617
  %798 = vmatprep.subr.mxu0 %v622
  %799 = vmatpush1.msra.mxu0 %v621
  %800 = vmatprep.subr.mxu0 %v626
  %801 = vmatpush1.msra.mxu0 %v625
  %802 = vmatprep.subr.mxu0 %v630
  %803 = vmatpush1.msra.mxu0 %v629
  %804 = vmatprep.subr.mxu0 %v634
  %805 = vmatpush1.msra.mxu0 %v633
  %806 = vmatprep.subr.mxu0 %v638
  %807 = vmatpush1.msra.mxu0 %v637
  %808 = vmatprep.subr.mxu0 %v642
  %809 = vmatpush1.msra.mxu0 %v641
  %810 = vmatprep.subr.mxu0 %v646
  %811 = vmatpush1.msra.mxu0 %v645
  %812 = vmatprep.subr.mxu0 %v650
  %813 = vmatpush1.msra.mxu0 %v649
  %814 = vmatprep.subr.mxu0 %v654
  %815 = vmatpush1.msra.mxu0 %v653
  %816 = vmatprep.subr.mxu0 %v658
  %817 = vmatpush1.msra.mxu0 %v657
  %818 = vmatprep.subr.mxu0 %v662
  %819 = vmatpush1.msra.mxu0 %v661
  %820 = vmatprep.subr.mxu0 %v666
  %821 = vmatpush1.msra.mxu0 %v665
  %822 = vmatprep.subr.mxu0 %v670
  %823 = vmatpush1.msra.mxu0 %v669
  %824 = vmatprep.subr.mxu0 %v674
  %825 = vmatpush1.msra.mxu0 %v673
  %826 = vmatprep.subr.mxu0 %v678
  %827 = vmatpush1.msra.mxu0 %v677
  %828 = vmatprep.subr.mxu0 %v682
  %829 = vmatpush1.msra.mxu0 %v681
  %830 = vmatprep.subr.mxu0 %v686
  %831 = vmatpush1.msra.mxu0 %v685
  %832 = vmatprep.subr.mxu0 %v690
  %833 = vmatpush1.msra.mxu0 %v689
  %834 = vmatprep.mubr.f32.mxu0 %v429
  %835 = vmatmul.mubr.f32.gmra.mrb[0].mxu0 %v427
  %v836 = vpop.f32.mrb[0].mxu0
  %v837 = vadd.f32 %v760, %v836
  %v838 = vpop.f32.mrb[0].mxu0
  %v839 = vadd.f32 %v762, %v838
  %840 = vmatprep.mubr.f32.mxu0 %v435
  %841 = vmatmul.mubr.f32.gmra.mrb[0].mxu0 %v433
  %v842 = vpop.f32.mrb[0].mxu0
  %v843 = vadd.f32 %v766, %v842
  %v844 = vpop.f32.mrb[0].mxu0
  %v845 = vadd.f32 %v768, %v844
  %846 = vdwg.mxu0
  %847 = vmatprep.subr.mxu0 %v440
  %848 = vmatpush1.msra.mxu0 %v439
  %849 = vmatprep.subr.mxu0 %v444
  %850 = vmatpush1.msra.mxu0 %v443
  %851 = vmatprep.subr.mxu0 %v448
  %852 = vmatpush1.msra.mxu0 %v447
  %853 = vmatprep.subr.mxu0 %v452
  %854 = vmatpush1.msra.mxu0 %v451
  %855 = vmatprep.subr.mxu0 %v456
  %856 = vmatpush1.msra.mxu0 %v455
  %857 = vmatprep.subr.mxu0 %v460
  %858 = vmatpush1.msra.mxu0 %v459
  %859 = vmatprep.subr.mxu0 %v464
  %860 = vmatpush1.msra.mxu0 %v463
  %861 = vmatprep.subr.mxu0 %v468
  %862 = vmatpush1.msra.mxu0 %v467
  %863 = vmatprep.subr.mxu0 %v472
  %864 = vmatpush1.msra.mxu0 %v471
  %865 = vmatprep.subr.mxu0 %v476
  %866 = vmatpush1.msra.mxu0 %v475
  %867 = vmatprep.subr.mxu0 %v480
  %868 = vmatpush1.msra.mxu0 %v479
  %869 = vmatprep.subr.mxu0 %v484
  %870 = vmatpush1.msra.mxu0 %v483
  %871 = vmatprep.subr.mxu0 %v488
  %872 = vmatpush1.msra.mxu0 %v487
  %873 = vmatprep.subr.mxu0 %v492
  %874 = vmatpush1.msra.mxu0 %v491
  %875 = vmatprep.subr.mxu0 %v496
  %876 = vmatpush1.msra.mxu0 %v495
  %877 = vmatprep.subr.mxu0 %v500
  %878 = vmatpush1.msra.mxu0 %v499
  %879 = vmatprep.subr.mxu0 %v504
  %880 = vmatpush1.msra.mxu0 %v503
  %881 = vmatprep.subr.mxu0 %v508
  %882 = vmatpush1.msra.mxu0 %v507
  %883 = vmatprep.subr.mxu0 %v512
  %884 = vmatpush1.msra.mxu0 %v511
  %885 = vmatprep.subr.mxu0 %v516
  %886 = vmatpush1.msra.mxu0 %v515
  %887 = vmatprep.subr.mxu0 %v520
  %888 = vmatpush1.msra.mxu0 %v519
  %889 = vmatprep.subr.mxu0 %v524
  %890 = vmatpush1.msra.mxu0 %v523
  %891 = vmatprep.subr.mxu0 %v528
  %892 = vmatpush1.msra.mxu0 %v527
  %893 = vmatprep.subr.mxu0 %v532
  %894 = vmatpush1.msra.mxu0 %v531
  %895 = vmatprep.subr.mxu0 %v536
  %896 = vmatpush1.msra.mxu0 %v535
  %897 = vmatprep.subr.mxu0 %v540
  %898 = vmatpush1.msra.mxu0 %v539
  %899 = vmatprep.subr.mxu0 %v544
  %900 = vmatpush1.msra.mxu0 %v543
  %901 = vmatprep.subr.mxu0 %v548
  %902 = vmatpush1.msra.mxu0 %v547
  %903 = vmatprep.subr.mxu0 %v552
  %904 = vmatpush1.msra.mxu0 %v551
  %905 = vmatprep.subr.mxu0 %v556
  %906 = vmatpush1.msra.mxu0 %v555
  %907 = vmatprep.subr.mxu0 %v560
  %908 = vmatpush1.msra.mxu0 %v559
  %909 = vmatprep.subr.mxu0 %v564
  %910 = vmatpush1.msra.mxu0 %v563
  %911 = vmatprep.mubr.f32.mxu0 %v352
  %912 = vmatmul.mubr.f32.gmra.mrb[0].mxu0 %v350
  %v913 = vpop.f32.mrb[0].mxu0
  %v914 = vadd.f32 0.0, %v913
  %v915 = vpop.f32.mrb[0].mxu0
  %v916 = vadd.f32 0.0, %v915
  %917 = vmatprep.mubr.f32.mxu0 %v358
  %918 = vmatmul.mubr.f32.gmra.mrb[0].mxu0 %v356
  %v919 = vpop.f32.mrb[0].mxu0
  %v920 = vadd.f32 0.0, %v919
  %v921 = vpop.f32.mrb[0].mxu0
  %v922 = vadd.f32 0.0, %v921
  %923 = vdwg.mxu0
  %924 = vmatprep.subr.mxu0 %v568
  %925 = vmatpush1.msra.mxu0 %v567
  %926 = vmatprep.subr.mxu0 %v572
  %927 = vmatpush1.msra.mxu0 %v571
  %928 = vmatprep.subr.mxu0 %v576
  %929 = vmatpush1.msra.mxu0 %v575
  %930 = vmatprep.subr.mxu0 %v580
  %931 = vmatpush1.msra.mxu0 %v579
  %932 = vmatprep.subr.mxu0 %v584
  %933 = vmatpush1.msra.mxu0 %v583
  %934 = vmatprep.subr.mxu0 %v588
  %935 = vmatpush1.msra.mxu0 %v587
  %936 = vmatprep.subr.mxu0 %v592
  %937 = vmatpush1.msra.mxu0 %v591
  %938 = vmatprep.subr.mxu0 %v596
  %939 = vmatpush1.msra.mxu0 %v595
  %940 = vmatprep.subr.mxu0 %v600
  %941 = vmatpush1.msra.mxu0 %v599
  %942 = vmatprep.subr.mxu0 %v604
  %943 = vmatpush1.msra.mxu0 %v603
  %944 = vmatprep.subr.mxu0 %v608
  %945 = vmatpush1.msra.mxu0 %v607
  %946 = vmatprep.subr.mxu0 %v612
  %947 = vmatpush1.msra.mxu0 %v611
  %948 = vmatprep.subr.mxu0 %v616
  %949 = vmatpush1.msra.mxu0 %v615
  %950 = vmatprep.subr.mxu0 %v620
  %951 = vmatpush1.msra.mxu0 %v619
  %952 = vmatprep.subr.mxu0 %v624
  %953 = vmatpush1.msra.mxu0 %v623
  %954 = vmatprep.subr.mxu0 %v628
  %955 = vmatpush1.msra.mxu0 %v627
  %956 = vmatprep.subr.mxu0 %v632
  %957 = vmatpush1.msra.mxu0 %v631
  %958 = vmatprep.subr.mxu0 %v636
  %959 = vmatpush1.msra.mxu0 %v635
  %960 = vmatprep.subr.mxu0 %v640
  %961 = vmatpush1.msra.mxu0 %v639
  %962 = vmatprep.subr.mxu0 %v644
  %963 = vmatpush1.msra.mxu0 %v643
  %964 = vmatprep.subr.mxu0 %v648
  %965 = vmatpush1.msra.mxu0 %v647
  %966 = vmatprep.subr.mxu0 %v652
  %967 = vmatpush1.msra.mxu0 %v651
  %968 = vmatprep.subr.mxu0 %v656
  %969 = vmatpush1.msra.mxu0 %v655
  %970 = vmatprep.subr.mxu0 %v660
  %971 = vmatpush1.msra.mxu0 %v659
  %972 = vmatprep.subr.mxu0 %v664
  %973 = vmatpush1.msra.mxu0 %v663
  %974 = vmatprep.subr.mxu0 %v668
  %975 = vmatpush1.msra.mxu0 %v667
  %976 = vmatprep.subr.mxu0 %v672
  %977 = vmatpush1.msra.mxu0 %v671
  %978 = vmatprep.subr.mxu0 %v676
  %979 = vmatpush1.msra.mxu0 %v675
  %980 = vmatprep.subr.mxu0 %v680
  %981 = vmatpush1.msra.mxu0 %v679
  %982 = vmatprep.subr.mxu0 %v684
  %983 = vmatpush1.msra.mxu0 %v683
  %984 = vmatprep.subr.mxu0 %v688
  %985 = vmatpush1.msra.mxu0 %v687
  %986 = vmatprep.subr.mxu0 %v692
  %987 = vmatpush1.msra.mxu0 %v691
  %988 = vmatprep.mubr.f32.mxu0 %v429
  %989 = vmatmul.mubr.f32.gmra.mrb[0].mxu0 %v427
  %v990 = vpop.f32.mrb[0].mxu0
  %v991 = vadd.f32 %v914, %v990
  %v992 = vpop.f32.mrb[0].mxu0
  %v993 = vadd.f32 %v916, %v992
  %994 = vmatprep.mubr.f32.mxu0 %v435
  %995 = vmatmul.mubr.f32.gmra.mrb[0].mxu0 %v433
  %v996 = vpop.f32.mrb[0].mxu0
  %v997 = vadd.f32 %v920, %v996
  %v998 = vpop.f32.mrb[0].mxu0
  %v999 = vadd.f32 %v922, %v998
  %1000 = vdwg.mxu0
  %1001 = vmatprep.subr.mxu0 %v839
  %1002 = vmatpush1.msra.mxu0 %v837
  %1003 = vmatprep.subr.mxu0 %v845
  %1004 = vmatpush1.msra.mxu0 %v843
  %1005 = vmatprep.subr.mxu0 0.0
  %1006 = vmatpush1.msra.mxu0 0.0
  %1007 = vmatprep.subr.mxu0 0.0
  %1008 = vmatpush1.msra.mxu0 0.0
  %1009 = vmatprep.subr.mxu0 0.0
  %1010 = vmatpush1.msra.mxu0 0.0
  %1011 = vmatprep.subr.mxu0 0.0
  %1012 = vmatpush1.msra.mxu0 0.0
  %1013 = vmatprep.subr.mxu0 0.0
  %1014 = vmatpush1.msra.mxu0 0.0
  %1015 = vmatprep.subr.mxu0 0.0
  %1016 = vmatpush1.msra.mxu0 0.0
  %1017 = vmatprep.subr.mxu0 0.0
  %1018 = vmatpush1.msra.mxu0 0.0
  %1019 = vmatprep.subr.mxu0 0.0
  %1020 = vmatpush1.msra.mxu0 0.0
  %1021 = vmatprep.subr.mxu0 0.0
  %1022 = vmatpush1.msra.mxu0 0.0
  %1023 = vmatprep.subr.mxu0 0.0
  %1024 = vmatpush1.msra.mxu0 0.0
  %1025 = vmatprep.subr.mxu0 0.0
  %1026 = vmatpush1.msra.mxu0 0.0
  %1027 = vmatprep.subr.mxu0 0.0
  %1028 = vmatpush1.msra.mxu0 0.0
  %1029 = vmatprep.subr.mxu0 0.0
  %1030 = vmatpush1.msra.mxu0 0.0
  %1031 = vmatprep.subr.mxu0 0.0
  %1032 = vmatpush1.msra.mxu0 0.0
  %1033 = vmatprep.subr.mxu0 0.0
  %1034 = vmatpush1.msra.mxu0 0.0
  %1035 = vmatprep.subr.mxu0 0.0
  %1036 = vmatpush1.msra.mxu0 0.0
  %1037 = vmatprep.subr.mxu0 0.0
  %1038 = vmatpush1.msra.mxu0 0.0
  %1039 = vmatprep.subr.mxu0 0.0
  %1040 = vmatpush1.msra.mxu0 0.0
  %1041 = vmatprep.subr.mxu0 0.0
  %1042 = vmatpush1.msra.mxu0 0.0
  %1043 = vmatprep.subr.mxu0 0.0
  %1044 = vmatpush1.msra.mxu0 0.0
  %1045 = vmatprep.subr.mxu0 0.0
  %1046 = vmatpush1.msra.mxu0 0.0
  %1047 = vmatprep.subr.mxu0 0.0
  %1048 = vmatpush1.msra.mxu0 0.0
  %1049 = vmatprep.subr.mxu0 0.0
  %1050 = vmatpush1.msra.mxu0 0.0
  %1051 = vmatprep.subr.mxu0 0.0
  %1052 = vmatpush1.msra.mxu0 0.0
  %1053 = vmatprep.subr.mxu0 0.0
  %1054 = vmatpush1.msra.mxu0 0.0
  %1055 = vmatprep.subr.mxu0 0.0
  %1056 = vmatpush1.msra.mxu0 0.0
  %1057 = vmatprep.subr.mxu0 0.0
  %1058 = vmatpush1.msra.mxu0 0.0
  %1059 = vmatprep.subr.mxu0 0.0
  %1060 = vmatpush1.msra.mxu0 0.0
  %1061 = vmatprep.subr.mxu0 0.0
  %1062 = vmatpush1.msra.mxu0 0.0
  %1063 = vmatprep.subr.mxu0 0.0
  %1064 = vmatpush1.msra.mxu0 0.0
  %1065 = vmatprep.mubr.f32.mxu0 0.0
  %1066 = vmatmul.mubr.f32.gmra.mrb[0].mxu0 %v278
  %v1067 = vpop.f32.mrb[0].mxu0
  %v1068 = vadd.f32 0.0, %v1067
  %v1069 = vpop.f32.mrb[0].mxu0
  %v1070 = vadd.f32 0.0, %v1069
  %1071 = vmatprep.mubr.f32.mxu0 0.0
  %1072 = vmatmul.mubr.f32.gmra.mrb[0].mxu0 %v281
  %v1073 = vpop.f32.mrb[0].mxu0
  %v1074 = vadd.f32 0.0, %v1073
  %v1075 = vpop.f32.mrb[0].mxu0
  %v1076 = vadd.f32 0.0, %v1075
  %1077 = vdwg.mxu0
  %1078 = vmatprep.subr.mxu0 %v993
  %1079 = vmatpush1.msra.mxu0 %v991
  %1080 = vmatprep.subr.mxu0 %v999
  %1081 = vmatpush1.msra.mxu0 %v997
  %1082 = vmatprep.subr.mxu0 0.0
  %1083 = vmatpush1.msra.mxu0 0.0
  %1084 = vmatprep.subr.mxu0 0.0
  %1085 = vmatpush1.msra.mxu0 0.0
  %1086 = vmatprep.subr.mxu0 0.0
  %1087 = vmatpush1.msra.mxu0 0.0
  %1088 = vmatprep.subr.mxu0 0.0
  %1089 = vmatpush1.msra.mxu0 0.0
  %1090 = vmatprep.subr.mxu0 0.0
  %1091 = vmatpush1.msra.mxu0 0.0
  %1092 = vmatprep.subr.mxu0 0.0
  %1093 = vmatpush1.msra.mxu0 0.0
  %1094 = vmatprep.subr.mxu0 0.0
  %1095 = vmatpush1.msra.mxu0 0.0
  %1096 = vmatprep.subr.mxu0 0.0
  %1097 = vmatpush1.msra.mxu0 0.0
  %1098 = vmatprep.subr.mxu0 0.0
  %1099 = vmatpush1.msra.mxu0 0.0
  %1100 = vmatprep.subr.mxu0 0.0
  %1101 = vmatpush1.msra.mxu0 0.0
  %1102 = vmatprep.subr.mxu0 0.0
  %1103 = vmatpush1.msra.mxu0 0.0
  %1104 = vmatprep.subr.mxu0 0.0
  %1105 = vmatpush1.msra.mxu0 0.0
  %1106 = vmatprep.subr.mxu0 0.0
  %1107 = vmatpush1.msra.mxu0 0.0
  %1108 = vmatprep.subr.mxu0 0.0
  %1109 = vmatpush1.msra.mxu0 0.0
  %1110 = vmatprep.subr.mxu0 0.0
  %1111 = vmatpush1.msra.mxu0 0.0
  %1112 = vmatprep.subr.mxu0 0.0
  %1113 = vmatpush1.msra.mxu0 0.0
  %1114 = vmatprep.subr.mxu0 0.0
  %1115 = vmatpush1.msra.mxu0 0.0
  %1116 = vmatprep.subr.mxu0 0.0
  %1117 = vmatpush1.msra.mxu0 0.0
  %1118 = vmatprep.subr.mxu0 0.0
  %1119 = vmatpush1.msra.mxu0 0.0
  %1120 = vmatprep.subr.mxu0 0.0
  %1121 = vmatpush1.msra.mxu0 0.0
  %1122 = vmatprep.subr.mxu0 0.0
  %1123 = vmatpush1.msra.mxu0 0.0
  %1124 = vmatprep.subr.mxu0 0.0
  %1125 = vmatpush1.msra.mxu0 0.0
  %1126 = vmatprep.subr.mxu0 0.0
  %1127 = vmatpush1.msra.mxu0 0.0
  %1128 = vmatprep.subr.mxu0 0.0
  %1129 = vmatpush1.msra.mxu0 0.0
  %1130 = vmatprep.subr.mxu0 0.0
  %1131 = vmatpush1.msra.mxu0 0.0
  %1132 = vmatprep.subr.mxu0 0.0
  %1133 = vmatpush1.msra.mxu0 0.0
  %1134 = vmatprep.subr.mxu0 0.0
  %1135 = vmatpush1.msra.mxu0 0.0
  %1136 = vmatprep.subr.mxu0 0.0
  %1137 = vmatpush1.msra.mxu0 0.0
  %1138 = vmatprep.subr.mxu0 0.0
  %1139 = vmatpush1.msra.mxu0 0.0
  %1140 = vmatprep.subr.mxu0 0.0
  %1141 = vmatpush1.msra.mxu0 0.0
  %1142 = vmatprep.mubr.f32.mxu0 0.0
  %1143 = vmatmul.mubr.f32.gmra.mrb[0].mxu0 %v278
  %v1144 = vpop.f32.mrb[0].mxu0
  %v1145 = vadd.f32 0.0, %v1144
  %v1146 = vpop.f32.mrb[0].mxu0
  %v1147 = vadd.f32 0.0, %v1146
  %1148 = vmatprep.mubr.f32.mxu0 0.0
  %1149 = vmatmul.mubr.f32.gmra.mrb[0].mxu0 %v281
  %v1150 = vpop.f32.mrb[0].mxu0
  %v1151 = vadd.f32 0.0, %v1150
  %v1152 = vpop.f32.mrb[0].mxu0
  %v1153 = vadd.f32 0.0, %v1152
  %1154 = vdwg.mxu0
  %v1155 = vld [vmem:[%s6] sm:$0xff]
  %v1156 = vld [vmem:[%s6 + $0x8] sm:$0xff]
  %v1157 = vld [vmem:[%s6 + $0x10] sm:$0xff]
  %v1158 = vld [vmem:[%s6 + $0x18] sm:$0xff]
  %v1159 = vld [vmem:[%s6 + $0x20] sm:$0xff]
  %v1160 = vld [vmem:[%s6 + $0x28] sm:$0xff]
  %v1161 = vld [vmem:[%s6 + $0x30] sm:$0xff]
  %v1162 = vld [vmem:[%s6 + $0x38] sm:$0xff]
  %v1163 = vld [vmem:[%s6 + $0x40] sm:$0xff]
  %v1164 = vld [vmem:[%s6 + $0x48] sm:$0xff]
  %v1165 = vld [vmem:[%s6 + $0x50] sm:$0xff]
  %v1166 = vld [vmem:[%s6 + $0x58] sm:$0xff]
  %v1167 = vld [vmem:[%s6 + $0x60] sm:$0xff]
  %v1168 = vld [vmem:[%s6 + $0x68] sm:$0xff]
  %v1169 = vld [vmem:[%s6 + $0x70] sm:$0xff]
  %v1170 = vld [vmem:[%s6 + $0x78] sm:$0xff]
  %v1171 = vld [vmem:[%s6 + $0x80] sm:$0xff]
  %v1172 = vld [vmem:[%s6 + $0x88] sm:$0xff]
  %v1173 = vld [vmem:[%s6 + $0x90] sm:$0xff]
  %v1174 = vld [vmem:[%s6 + $0x98] sm:$0xff]
  %v1175 = vld [vmem:[%s6 + $0xa0] sm:$0xff]
  %v1176 = vld [vmem:[%s6 + $0xa8] sm:$0xff]
  %v1177 = vld [vmem:[%s6 + $0xb0] sm:$0xff]
  %v1178 = vld [vmem:[%s6 + $0xb8] sm:$0xff]
  %v1179 = vld [vmem:[%s6 + $0xc0] sm:$0xff]
  %v1180 = vld [vmem:[%s6 + $0xc8] sm:$0xff]
  %v1181 = vld [vmem:[%s6 + $0xd0] sm:$0xff]
  %v1182 = vld [vmem:[%s6 + $0xd8] sm:$0xff]
  %v1183 = vld [vmem:[%s6 + $0xe0] sm:$0xff]
  %v1184 = vld [vmem:[%s6 + $0xe8] sm:$0xff]
  %v1185 = vld [vmem:[%s6 + $0xf0] sm:$0xff]
  %v1186 = vld [vmem:[%s6 + $0xf8] sm:$0xff]
  %v1187 = vld [vmem:[%s6 + $0x100] sm:$0xff]
  %v1188 = vld [vmem:[%s6 + $0x108] sm:$0xff]
  %v1189 = vld [vmem:[%s6 + $0x110] sm:$0xff]
  %v1190 = vld [vmem:[%s6 + $0x118] sm:$0xff]
  %v1191 = vld [vmem:[%s6 + $0x120] sm:$0xff]
  %v1192 = vld [vmem:[%s6 + $0x128] sm:$0xff]
  %v1193 = vld [vmem:[%s6 + $0x130] sm:$0xff]
  %v1194 = vld [vmem:[%s6 + $0x138] sm:$0xff]
  %v1195 = vld [vmem:[%s6 + $0x140] sm:$0xff]
  %v1196 = vld [vmem:[%s6 + $0x148] sm:$0xff]
  %v1197 = vld [vmem:[%s6 + $0x150] sm:$0xff]
  %v1198 = vld [vmem:[%s6 + $0x158] sm:$0xff]
  %v1199 = vld [vmem:[%s6 + $0x160] sm:$0xff]
  %v1200 = vld [vmem:[%s6 + $0x168] sm:$0xff]
  %v1201 = vld [vmem:[%s6 + $0x170] sm:$0xff]
  %v1202 = vld [vmem:[%s6 + $0x178] sm:$0xff]
  %v1203 = vld [vmem:[%s6 + $0x180] sm:$0xff]
  %v1204 = vld [vmem:[%s6 + $0x188] sm:$0xff]
  %v1205 = vld [vmem:[%s6 + $0x190] sm:$0xff]
  %v1206 = vld [vmem:[%s6 + $0x198] sm:$0xff]
  %v1207 = vld [vmem:[%s6 + $0x1a0] sm:$0xff]
  %v1208 = vld [vmem:[%s6 + $0x1a8] sm:$0xff]
  %v1209 = vld [vmem:[%s6 + $0x1b0] sm:$0xff]
  %v1210 = vld [vmem:[%s6 + $0x1b8] sm:$0xff]
  %v1211 = vld [vmem:[%s6 + $0x1c0] sm:$0xff]
  %v1212 = vld [vmem:[%s6 + $0x1c8] sm:$0xff]
  %v1213 = vld [vmem:[%s6 + $0x1d0] sm:$0xff]
  %v1214 = vld [vmem:[%s6 + $0x1d8] sm:$0xff]
  %v1215 = vld [vmem:[%s6 + $0x1e0] sm:$0xff]
  %v1216 = vld [vmem:[%s6 + $0x1e8] sm:$0xff]
  %v1217 = vld [vmem:[%s6 + $0x1f0] sm:$0xff]
  %v1218 = vld [vmem:[%s6 + $0x1f8] sm:$0xff]
  %v1219 = vld [vmem:[%s7] sm:$0x1]
  %v1221 = vlaneseq
  %v1222 = vshrl.u32 %v1221, 7
  %v1223 = vsub.s32 0, %v1222
  %v1224 = vrot.slane %v1219, %v1223
  %1226 = vmatprep.subr.mxu0 0.0
  %1227 = vmatpush1.msra.mxu0 %v1155
  %1228 = vmatprep.subr.mxu0 0.0
  %1229 = vmatpush1.msra.mxu0 %v1156
  %1230 = vmatprep.subr.mxu0 0.0
  %1231 = vmatpush1.msra.mxu0 %v1157
  %1232 = vmatprep.subr.mxu0 0.0
  %1233 = vmatpush1.msra.mxu0 %v1158
  %1234 = vmatprep.subr.mxu0 0.0
  %1235 = vmatpush1.msra.mxu0 %v1159
  %1236 = vmatprep.subr.mxu0 0.0
  %1237 = vmatpush1.msra.mxu0 %v1160
  %1238 = vmatprep.subr.mxu0 0.0
  %1239 = vmatpush1.msra.mxu0 %v1161
  %1240 = vmatprep.subr.mxu0 0.0
  %1241 = vmatpush1.msra.mxu0 %v1162
  %1242 = vmatprep.subr.mxu0 0.0
  %1243 = vmatpush1.msra.mxu0 %v1163
  %1244 = vmatprep.subr.mxu0 0.0
  %1245 = vmatpush1.msra.mxu0 %v1164
  %1246 = vmatprep.subr.mxu0 0.0
  %1247 = vmatpush1.msra.mxu0 %v1165
  %1248 = vmatprep.subr.mxu0 0.0
  %1249 = vmatpush1.msra.mxu0 %v1166
  %1250 = vmatprep.subr.mxu0 0.0
  %1251 = vmatpush1.msra.mxu0 %v1167
  %1252 = vmatprep.subr.mxu0 0.0
  %1253 = vmatpush1.msra.mxu0 %v1168
  %1254 = vmatprep.subr.mxu0 0.0
  %1255 = vmatpush1.msra.mxu0 %v1169
  %1256 = vmatprep.subr.mxu0 0.0
  %1257 = vmatpush1.msra.mxu0 %v1170
  %1258 = vmatprep.subr.mxu0 0.0
  %1259 = vmatpush1.msra.mxu0 %v1171
  %1260 = vmatprep.subr.mxu0 0.0
  %1261 = vmatpush1.msra.mxu0 %v1172
  %1262 = vmatprep.subr.mxu0 0.0
  %1263 = vmatpush1.msra.mxu0 %v1173
  %1264 = vmatprep.subr.mxu0 0.0
  %1265 = vmatpush1.msra.mxu0 %v1174
  %1266 = vmatprep.subr.mxu0 0.0
  %1267 = vmatpush1.msra.mxu0 %v1175
  %1268 = vmatprep.subr.mxu0 0.0
  %1269 = vmatpush1.msra.mxu0 %v1176
  %1270 = vmatprep.subr.mxu0 0.0
  %1271 = vmatpush1.msra.mxu0 %v1177
  %1272 = vmatprep.subr.mxu0 0.0
  %1273 = vmatpush1.msra.mxu0 %v1178
  %1274 = vmatprep.subr.mxu0 0.0
  %1275 = vmatpush1.msra.mxu0 %v1179
  %1276 = vmatprep.subr.mxu0 0.0
  %1277 = vmatpush1.msra.mxu0 %v1180
  %1278 = vmatprep.subr.mxu0 0.0
  %1279 = vmatpush1.msra.mxu0 %v1181
  %1280 = vmatprep.subr.mxu0 0.0
  %1281 = vmatpush1.msra.mxu0 %v1182
  %1282 = vmatprep.subr.mxu0 0.0
  %1283 = vmatpush1.msra.mxu0 %v1183
  %1284 = vmatprep.subr.mxu0 0.0
  %1285 = vmatpush1.msra.mxu0 %v1184
  %1286 = vmatprep.subr.mxu0 0.0
  %1287 = vmatpush1.msra.mxu0 %v1185
  %1288 = vmatprep.subr.mxu0 0.0
  %1289 = vmatpush1.msra.mxu0 %v1186
  %1290 = vmatprep.mubr.f32.mxu0 %v1070
  %1291 = vmatmul.mubr.f32.gmra.mrb[0].mxu0 %v1068
  %v1292 = vpop.f32.mrb[0].mxu0
  %v1293 = vadd.f32 %v1224, %v1292
  %v1294 = vpop.f32.mrb[0].mxu0
  %1295 = vmatprep.mubr.f32.mxu0 %v1076
  %1296 = vmatmul.mubr.f32.gmra.mrb[0].mxu0 %v1074
  %v1297 = vpop.f32.mrb[0].mxu0
  %v1298 = vadd.f32 %v1224, %v1297
  %v1299 = vpop.f32.mrb[0].mxu0
  %1300 = vdwg.mxu0
  %1301 = vmatprep.subr.mxu0 0.0
  %1302 = vmatpush1.msra.mxu0 %v1187
  %1303 = vmatprep.subr.mxu0 0.0
  %1304 = vmatpush1.msra.mxu0 %v1188
  %1305 = vmatprep.subr.mxu0 0.0
  %1306 = vmatpush1.msra.mxu0 %v1189
  %1307 = vmatprep.subr.mxu0 0.0
  %1308 = vmatpush1.msra.mxu0 %v1190
  %1309 = vmatprep.subr.mxu0 0.0
  %1310 = vmatpush1.msra.mxu0 %v1191
  %1311 = vmatprep.subr.mxu0 0.0
  %1312 = vmatpush1.msra.mxu0 %v1192
  %1313 = vmatprep.subr.mxu0 0.0
  %1314 = vmatpush1.msra.mxu0 %v1193
  %1315 = vmatprep.subr.mxu0 0.0
  %1316 = vmatpush1.msra.mxu0 %v1194
  %1317 = vmatprep.subr.mxu0 0.0
  %1318 = vmatpush1.msra.mxu0 %v1195
  %1319 = vmatprep.subr.mxu0 0.0
  %1320 = vmatpush1.msra.mxu0 %v1196
  %1321 = vmatprep.subr.mxu0 0.0
  %1322 = vmatpush1.msra.mxu0 %v1197
  %1323 = vmatprep.subr.mxu0 0.0
  %1324 = vmatpush1.msra.mxu0 %v1198
  %1325 = vmatprep.subr.mxu0 0.0
  %1326 = vmatpush1.msra.mxu0 %v1199
  %1327 = vmatprep.subr.mxu0 0.0
  %1328 = vmatpush1.msra.mxu0 %v1200
  %1329 = vmatprep.subr.mxu0 0.0
  %1330 = vmatpush1.msra.mxu0 %v1201
  %1331 = vmatprep.subr.mxu0 0.0
  %1332 = vmatpush1.msra.mxu0 %v1202
  %1333 = vmatprep.subr.mxu0 0.0
  %1334 = vmatpush1.msra.mxu0 %v1203
  %1335 = vmatprep.subr.mxu0 0.0
  %1336 = vmatpush1.msra.mxu0 %v1204
  %1337 = vmatprep.subr.mxu0 0.0
  %1338 = vmatpush1.msra.mxu0 %v1205
  %1339 = vmatprep.subr.mxu0 0.0
  %1340 = vmatpush1.msra.mxu0 %v1206
  %1341 = vmatprep.subr.mxu0 0.0
  %1342 = vmatpush1.msra.mxu0 %v1207
  %1343 = vmatprep.subr.mxu0 0.0
  %1344 = vmatpush1.msra.mxu0 %v1208
  %1345 = vmatprep.subr.mxu0 0.0
  %1346 = vmatpush1.msra.mxu0 %v1209
  %1347 = vmatprep.subr.mxu0 0.0
  %1348 = vmatpush1.msra.mxu0 %v1210
  %1349 = vmatprep.subr.mxu0 0.0
  %1350 = vmatpush1.msra.mxu0 %v1211
  %1351 = vmatprep.subr.mxu0 0.0
  %1352 = vmatpush1.msra.mxu0 %v1212
  %1353 = vmatprep.subr.mxu0 0.0
  %1354 = vmatpush1.msra.mxu0 %v1213
  %1355 = vmatprep.subr.mxu0 0.0
  %1356 = vmatpush1.msra.mxu0 %v1214
  %1357 = vmatprep.subr.mxu0 0.0
  %1358 = vmatpush1.msra.mxu0 %v1215
  %1359 = vmatprep.subr.mxu0 0.0
  %1360 = vmatpush1.msra.mxu0 %v1216
  %1361 = vmatprep.subr.mxu0 0.0
  %1362 = vmatpush1.msra.mxu0 %v1217
  %1363 = vmatprep.subr.mxu0 0.0
  %1364 = vmatpush1.msra.mxu0 %v1218
  %1365 = vmatprep.mubr.f32.mxu0 %v1147
  %1366 = vmatmul.mubr.f32.gmra.mrb[0].mxu0 %v1145
  %v1367 = vpop.f32.mrb[0].mxu0
  %v1368 = vadd.f32 %v1293, %v1367
  %v1369 = vpop.f32.mrb[0].mxu0
  %1370 = vmatprep.mubr.f32.mxu0 %v1153
  %1371 = vmatmul.mubr.f32.gmra.mrb[0].mxu0 %v1151
  %v1372 = vpop.f32.mrb[0].mxu0
  %v1373 = vadd.f32 %v1298, %v1372
  %v1374 = vpop.f32.mrb[0].mxu0
  %1375 = vdwg.mxu0
  %v1376 = vld [vmem:[%s2] sm:$0x3]
  %v1377 = vld [vmem:[%s8] sm:$0xff]
  %v1378 = vld [vmem:[%s8 + $0x8] sm:$0xff]
  %v1379 = vld [vmem:[%s8 + $0x10] sm:$0xff]
  %v1380 = vld [vmem:[%s8 + $0x18] sm:$0xff]
  %v1381 = vld [vmem:[%s8 + $0x20] sm:$0xff]
  %v1382 = vld [vmem:[%s8 + $0x28] sm:$0xff]
  %v1383 = vld [vmem:[%s8 + $0x30] sm:$0xff]
  %v1384 = vld [vmem:[%s8 + $0x38] sm:$0xff]
  %v1385 = vld [vmem:[%s8 + $0x40] sm:$0xff]
  %v1386 = vld [vmem:[%s8 + $0x48] sm:$0xff]
  %v1387 = vld [vmem:[%s8 + $0x50] sm:$0xff]
  %v1388 = vld [vmem:[%s8 + $0x58] sm:$0xff]
  %v1389 = vld [vmem:[%s8 + $0x60] sm:$0xff]
  %v1390 = vld [vmem:[%s8 + $0x68] sm:$0xff]
  %v1391 = vld [vmem:[%s8 + $0x70] sm:$0xff]
  %v1392 = vld [vmem:[%s8 + $0x78] sm:$0xff]
  %v1393 = vld [vmem:[#allocation2] sm:$0x1]
  %v1395 = vlaneseq
  %v1396 = vshrl.u32 %v1395, 7
  %v1397 = vsub.s32 0, %v1396
  %v1398 = vrot.slane %v1393, %v1397
  %1400 = vmatprep.subr.mxu0 0.0
  %1401 = vmatpush1.msra.mxu0 %v1377
  %1402 = vmatprep.subr.mxu0 0.0
  %1403 = vmatpush1.msra.mxu0 %v1378
  %1404 = vmatprep.subr.mxu0 0.0
  %1405 = vmatpush1.msra.mxu0 %v1379
  %1406 = vmatprep.subr.mxu0 0.0
  %1407 = vmatpush1.msra.mxu0 %v1380
  %1408 = vmatprep.subr.mxu0 0.0
  %1409 = vmatpush1.msra.mxu0 %v1381
  %1410 = vmatprep.subr.mxu0 0.0
  %1411 = vmatpush1.msra.mxu0 %v1382
  %1412 = vmatprep.subr.mxu0 0.0
  %1413 = vmatpush1.msra.mxu0 %v1383
  %1414 = vmatprep.subr.mxu0 0.0
  %1415 = vmatpush1.msra.mxu0 %v1384
  %1416 = vmatprep.subr.mxu0 0.0
  %1417 = vmatpush1.msra.mxu0 %v1385
  %1418 = vmatprep.subr.mxu0 0.0
  %1419 = vmatpush1.msra.mxu0 %v1386
  %1420 = vmatprep.subr.mxu0 0.0
  %1421 = vmatpush1.msra.mxu0 %v1387
  %1422 = vmatprep.subr.mxu0 0.0
  %1423 = vmatpush1.msra.mxu0 %v1388
  %1424 = vmatprep.subr.mxu0 0.0
  %1425 = vmatpush1.msra.mxu0 %v1389
  %1426 = vmatprep.subr.mxu0 0.0
  %1427 = vmatpush1.msra.mxu0 %v1390
  %1428 = vmatprep.subr.mxu0 0.0
  %1429 = vmatpush1.msra.mxu0 %v1391
  %1430 = vmatprep.subr.mxu0 0.0
  %1431 = vmatpush1.msra.mxu0 %v1392
  %1432 = vmatprep.subr.mxu0 0.0
  %1433 = vmatpush1.msra.mxu0 0.0
  %1434 = vmatprep.subr.mxu0 0.0
  %1435 = vmatpush1.msra.mxu0 0.0
  %1436 = vmatprep.subr.mxu0 0.0
  %1437 = vmatpush1.msra.mxu0 0.0
  %1438 = vmatprep.subr.mxu0 0.0
  %1439 = vmatpush1.msra.mxu0 0.0
  %1440 = vmatprep.subr.mxu0 0.0
  %1441 = vmatpush1.msra.mxu0 0.0
  %1442 = vmatprep.subr.mxu0 0.0
  %1443 = vmatpush1.msra.mxu0 0.0
  %1444 = vmatprep.subr.mxu0 0.0
  %1445 = vmatpush1.msra.mxu0 0.0
  %1446 = vmatprep.subr.mxu0 0.0
  %1447 = vmatpush1.msra.mxu0 0.0
  %1448 = vmatprep.subr.mxu0 0.0
  %1449 = vmatpush1.msra.mxu0 0.0
  %1450 = vmatprep.subr.mxu0 0.0
  %1451 = vmatpush1.msra.mxu0 0.0
  %1452 = vmatprep.subr.mxu0 0.0
  %1453 = vmatpush1.msra.mxu0 0.0
  %1454 = vmatprep.subr.mxu0 0.0
  %1455 = vmatpush1.msra.mxu0 0.0
  %1456 = vmatprep.subr.mxu0 0.0
  %1457 = vmatpush1.msra.mxu0 0.0
  %1458 = vmatprep.subr.mxu0 0.0
  %1459 = vmatpush1.msra.mxu0 0.0
  %1460 = vmatprep.subr.mxu0 0.0
  %1461 = vmatpush1.msra.mxu0 0.0
  %1462 = vmatprep.subr.mxu0 0.0
  %1463 = vmatpush1.msra.mxu0 0.0
  %1464 = vmatprep.mubr.f32.mxu0 0.0
  %1465 = vmatmul.mubr.f32.gmra.mrb[0].mxu0 %v1368
  %v1466 = vpop.f32.mrb[0].mxu0
  %v1467 = vadd.f32 %v1398, %v1466
  %v1468 = vpop.f32.mrb[0].mxu0
  %1469 = vmatprep.mubr.f32.mxu0 0.0
  %1470 = vmatmul.mubr.f32.gmra.mrb[0].mxu0 %v1373
  %v1471 = vpop.f32.mrb[0].mxu0
  %v1472 = vadd.f32 %v1398, %v1471
  %v1473 = vpop.f32.mrb[0].mxu0
  %1474 = vdwg.mxu0
  %v1475 = vxor.u32 %v1467, 2147483648
  %v1476 = vxor.u32 %v1472, 2147483648
  %v1477 = vmul.f32 %v1475, 1.442695
  %v1478 = vpow.pop %v1477
  %v1479 = vmul.f32 %v1476, 1.442695
  %v1480 = vpow.pop %v1479
  %v1481 = vadd.f32 %v1478, 1.0
  %v1482 = vadd.f32 %v1480, 1.0
  %v1483 = vrcp.pop %v1481
  %v1484 = vmul.f32 1.0, %v1483
  %v1485 = vrcp.pop %v1482
  %v1486 = vmul.f32 1.0, %v1485
  %1488 = vset.pattern.permute.xlu0 0
  %1489 = vperm.xlu0 %1488, %v1484
  %v1490 = vpop.permute.xlu0 %1489
  %1493 = vset.pattern.permute.xlu0 0
  %1494 = vperm.xlu0 %1493, %v1486
  %v1495 = vpop.permute.xlu0 %1494
  %v1497 = vmul.f32 %v1490, %v1368
  %v1498 = vmul.f32 %v1495, %v1373
  %v1500 = vsel %vm276, %v1376, 0
  %1502 = vmatprep.subr.mxu0 0.0
  %1503 = vmatpush1.msra.mxu0 %v1497
  %1504 = vmatprep.subr.mxu0 0.0
  %1505 = vmatpush1.msra.mxu0 %v1498
  %1506 = vmatprep.subr.mxu0 0.0
  %1507 = vmatpush1.msra.mxu0 0.0
  %1508 = vmatprep.subr.mxu0 0.0
  %1509 = vmatpush1.msra.mxu0 0.0
  %1510 = vmatprep.subr.mxu0 0.0
  %1511 = vmatpush1.msra.mxu0 0.0
  %1512 = vmatprep.subr.mxu0 0.0
  %1513 = vmatpush1.msra.mxu0 0.0
  %1514 = vmatprep.subr.mxu0 0.0
  %1515 = vmatpush1.msra.mxu0 0.0
  %1516 = vmatprep.subr.mxu0 0.0
  %1517 = vmatpush1.msra.mxu0 0.0
  %1518 = vmatprep.subr.mxu0 0.0
  %1519 = vmatpush1.msra.mxu0 0.0
  %1520 = vmatprep.subr.mxu0 0.0
  %1521 = vmatpush1.msra.mxu0 0.0
  %1522 = vmatprep.subr.mxu0 0.0
  %1523 = vmatpush1.msra.mxu0 0.0
  %1524 = vmatprep.subr.mxu0 0.0
  %1525 = vmatpush1.msra.mxu0 0.0
  %1526 = vmatprep.subr.mxu0 0.0
  %1527 = vmatpush1.msra.mxu0 0.0
  %1528 = vmatprep.subr.mxu0 0.0
  %1529 = vmatpush1.msra.mxu0 0.0
  %1530 = vmatprep.subr.mxu0 0.0
  %1531 = vmatpush1.msra.mxu0 0.0
  %1532 = vmatprep.subr.mxu0 0.0
  %1533 = vmatpush1.msra.mxu0 0.0
  %1534 = vmatprep.subr.mxu0 0.0
  %1535 = vmatpush1.msra.mxu0 0.0
  %1536 = vmatprep.subr.mxu0 0.0
  %1537 = vmatpush1.msra.mxu0 0.0
  %1538 = vmatprep.subr.mxu0 0.0
  %1539 = vmatpush1.msra.mxu0 0.0
  %1540 = vmatprep.subr.mxu0 0.0
  %1541 = vmatpush1.msra.mxu0 0.0
  %1542 = vmatprep.subr.mxu0 0.0
  %1543 = vmatpush1.msra.mxu0 0.0
  %1544 = vmatprep.subr.mxu0 0.0
  %1545 = vmatpush1.msra.mxu0 0.0
  %1546 = vmatprep.subr.mxu0 0.0
  %1547 = vmatpush1.msra.mxu0 0.0
  %1548 = vmatprep.subr.mxu0 0.0
  %1549 = vmatpush1.msra.mxu0 0.0
  %1550 = vmatprep.subr.mxu0 0.0
  %1551 = vmatpush1.msra.mxu0 0.0
  %1552 = vmatprep.subr.mxu0 0.0
  %1553 = vmatpush1.msra.mxu0 0.0
  %1554 = vmatprep.subr.mxu0 0.0
  %1555 = vmatpush1.msra.mxu0 0.0
  %1556 = vmatprep.subr.mxu0 0.0
  %1557 = vmatpush1.msra.mxu0 0.0
  %1558 = vmatprep.subr.mxu0 0.0
  %1559 = vmatpush1.msra.mxu0 0.0
  %1560 = vmatprep.subr.mxu0 0.0
  %1561 = vmatpush1.msra.mxu0 0.0
  %1562 = vmatprep.subr.mxu0 0.0
  %1563 = vmatpush1.msra.mxu0 0.0
  %1564 = vmatprep.subr.mxu0 0.0
  %1565 = vmatpush1.msra.mxu0 0.0
  %1566 = vmatprep.mubr.f32.mxu0 0.0
  %1567 = vmatmul.mubr.f32.gmra.mrb[0].mxu0 %v1500
  %v1568 = vpop.f32.mrb[0].mxu0
  %v1569 = vadd.f32 0.0, %v1568
  %v1570 = vpop.f32.mrb[0].mxu0
  %1571 = vdwg.mxu0
  %v1572 = vld [vmem:[%s3] sm:$0xff]
  %v1573 = vld [vmem:[%s3 + $0x8] sm:$0xff]
  %vm1574 = vcmp.gt.f32.partialorder %v1572, 0.0
  %vm1575 = vcmp.gt.f32.partialorder %v1573, 0.0
  %v1576 = vsel %vm1574, 1, 0
  %v1577 = vsel %vm1575, 1, 0
  %1578 = vset.pattern.permute.xlu0 0
  %1579 = vperm.xlu0 %1578, %v1576
  %v1580 = vpop.permute.xlu0 %1579
  %1581 = vset.pattern.permute.xlu0 0
  %1582 = vperm.xlu0 %1581, %v1577
  %v1583 = vpop.permute.xlu0 %1582
  %vm1584 = vcmp.eq.s32.totalorder %v1580, 1
  %vm1585 = vcmp.eq.s32.totalorder %v1583, 1
  %v1586 = vsel %vm1584, %v1368, -1e+30
  %v1587 = vsel %vm1585, %v1373, -1e+30
  %v1588 = vmax.f32 %v1586, %v1587
  %v1589 = vrot.slane %v1588, 4
  %v1590 = vmax.f32 %v1588, %v1589
  %v1591 = vrot.slane %v1590, 2
  %v1592 = vmax.f32 %v1590, %v1591
  %v1593 = vrot.slane %v1592, 1
  %v1594 = vmax.f32 %v1592, %v1593
  %vm1595 = vcmask 7168
  %v1596 = vsel %vm1595, %v1572, -inf
  %v1597 = vsel %vm1595, %v1573, -inf
  %v1598 = vmax.f32 %v1596, %v1597
  %1599 = vmax.xlane.f32.xlu0 %v1598
  %v1600 = vpop.xlane.xlu0 %1599
  %v1601 = vrot.slane %v1600, 4
  %v1602 = vmax.f32 %v1600, %v1601
  %v1603 = vrot.slane %v1602, 2
  %v1604 = vmax.f32 %v1602, %v1603
  %v1605 = vrot.slane %v1604, 1
  %v1606 = vmax.f32 %v1604, %v1605
  %s1607 = vtos %v1606
  %v1608 = vstv %s1607
  %vm1609 = vcmp.gt.f32.partialorder %v1608, 0.0
  %v1610 = vsel %vm1609, 1, 0
  %v1611 = vcvt.s32.f32 %v1610
  %v1612 = vmul.f32 %v1594, %v1611
  %1613 = vset.pattern.permute.xlu0 1
  %1614 = vperm.xlu0 %1613, %v1576
  %v1615 = vpop.permute.xlu0 %1614
  %1616 = vset.pattern.permute.xlu0 1
  %1617 = vperm.xlu0 %1616, %v1577
  %v1618 = vpop.permute.xlu0 %1617
  %vm1619 = vcmp.eq.s32.totalorder %v1615, 1
  %vm1620 = vcmp.eq.s32.totalorder %v1618, 1
  %v1621 = vsel %vm1619, %v1368, -1e+30
  %v1622 = vsel %vm1620, %v1373, -1e+30
  %v1623 = vmax.f32 %v1621, %v1622
  %v1624 = vrot.slane %v1623, 4
  %v1625 = vmax.f32 %v1623, %v1624
  %v1626 = vrot.slane %v1625, 2
  %v1627 = vmax.f32 %v1625, %v1626
  %v1628 = vrot.slane %v1627, 1
  %v1629 = vmax.f32 %v1627, %v1628
  %vm1630 = vcmask 15368
  %v1631 = vsel %vm1630, %v1572, -inf
  %v1632 = vsel %vm1630, %v1573, -inf
  %v1633 = vmax.f32 %v1631, %v1632
  %1634 = vmax.xlane.f32.xlu0 %v1633
  %v1635 = vpop.xlane.xlu0 %1634
  %v1636 = vrot.slane %v1635, 4
  %v1637 = vmax.f32 %v1635, %v1636
  %v1638 = vrot.slane %v1637, 2
  %v1639 = vmax.f32 %v1637, %v1638
  %v1640 = vrot.slane %v1639, 1
  %v1641 = vmax.f32 %v1639, %v1640
  %s1642 = vtos %v1641
  %v1643 = vstv %s1642
  %vm1644 = vcmp.gt.f32.partialorder %v1643, 0.0
  %v1645 = vsel %vm1644, 1, 0
  %v1646 = vcvt.s32.f32 %v1645
  %v1647 = vmul.f32 %v1629, %v1646
  %vm1648 = vcmask 1040384
  %v1649 = vsel %vm1648, %v1612, %v1647
  %v1650 = vld [vmem:[%s10] sm:$0xff]
  %v1651 = vld [vmem:[%s10 + $0x8] sm:$0xff]
  %v1652 = vld [vmem:[%s10 + $0x10] sm:$0xff]
  %v1653 = vld [vmem:[%s10 + $0x18] sm:$0xff]
  %v1654 = vld [vmem:[%s10 + $0x20] sm:$0xff]
  %v1655 = vld [vmem:[%s10 + $0x28] sm:$0xff]
  %v1656 = vld [vmem:[%s10 + $0x30] sm:$0xff]
  %v1657 = vld [vmem:[%s10 + $0x38] sm:$0xff]
  %v1658 = vld [vmem:[%s10 + $0x40] sm:$0xff]
  %v1659 = vld [vmem:[%s10 + $0x48] sm:$0xff]
  %v1660 = vld [vmem:[%s10 + $0x50] sm:$0xff]
  %v1661 = vld [vmem:[%s10 + $0x58] sm:$0xff]
  %v1662 = vld [vmem:[%s10 + $0x60] sm:$0xff]
  %v1663 = vld [vmem:[%s10 + $0x68] sm:$0xff]
  %v1664 = vld [vmem:[%s10 + $0x70] sm:$0xff]
  %v1665 = vld [vmem:[%s10 + $0x78] sm:$0xff]
  %v1666 = vld [vmem:[%s11] sm:$0xff]
  %v1667 = vld [vmem:[%s11 + $0x8] sm:$0xff]
  %v1668 = vld [vmem:[%s11 + $0x10] sm:$0xff]
  %v1669 = vld [vmem:[%s11 + $0x18] sm:$0xff]
  %v1670 = vld [vmem:[%s11 + $0x20] sm:$0xff]
  %v1671 = vld [vmem:[%s11 + $0x28] sm:$0xff]
  %v1672 = vld [vmem:[%s11 + $0x30] sm:$0xff]
  %v1673 = vld [vmem:[%s11 + $0x38] sm:$0xff]
  %v1674 = vld [vmem:[%s11 + $0x40] sm:$0xff]
  %v1675 = vld [vmem:[%s11 + $0x48] sm:$0xff]
  %v1676 = vld [vmem:[%s11 + $0x50] sm:$0xff]
  %v1677 = vld [vmem:[%s11 + $0x58] sm:$0xff]
  %v1678 = vld [vmem:[%s11 + $0x60] sm:$0xff]
  %v1679 = vld [vmem:[%s11 + $0x68] sm:$0xff]
  %v1680 = vld [vmem:[%s11 + $0x70] sm:$0xff]
  %v1681 = vld [vmem:[%s11 + $0x78] sm:$0xff]
  %1682 = vmatprep.subr.mxu0 0.0
  %1683 = vmatpush1.msra.mxu0 %v1666
  %1684 = vmatprep.subr.mxu0 0.0
  %1685 = vmatpush1.msra.mxu0 %v1667
  %1686 = vmatprep.subr.mxu0 0.0
  %1687 = vmatpush1.msra.mxu0 %v1668
  %1688 = vmatprep.subr.mxu0 0.0
  %1689 = vmatpush1.msra.mxu0 %v1669
  %1690 = vmatprep.subr.mxu0 0.0
  %1691 = vmatpush1.msra.mxu0 %v1670
  %1692 = vmatprep.subr.mxu0 0.0
  %1693 = vmatpush1.msra.mxu0 %v1671
  %1694 = vmatprep.subr.mxu0 0.0
  %1695 = vmatpush1.msra.mxu0 %v1672
  %1696 = vmatprep.subr.mxu0 0.0
  %1697 = vmatpush1.msra.mxu0 %v1673
  %1698 = vmatprep.subr.mxu0 0.0
  %1699 = vmatpush1.msra.mxu0 %v1674
  %1700 = vmatprep.subr.mxu0 0.0
  %1701 = vmatpush1.msra.mxu0 %v1675
  %1702 = vmatprep.subr.mxu0 0.0
  %1703 = vmatpush1.msra.mxu0 %v1676
  %1704 = vmatprep.subr.mxu0 0.0
  %1705 = vmatpush1.msra.mxu0 %v1677
  %1706 = vmatprep.subr.mxu0 0.0
  %1707 = vmatpush1.msra.mxu0 %v1678
  %1708 = vmatprep.subr.mxu0 0.0
  %1709 = vmatpush1.msra.mxu0 %v1679
  %1710 = vmatprep.subr.mxu0 0.0
  %1711 = vmatpush1.msra.mxu0 %v1680
  %1712 = vmatprep.subr.mxu0 0.0
  %1713 = vmatpush1.msra.mxu0 %v1681
  %1714 = vmatprep.subr.mxu0 0.0
  %1715 = vmatpush1.msra.mxu0 0.0
  %1716 = vmatprep.subr.mxu0 0.0
  %1717 = vmatpush1.msra.mxu0 0.0
  %1718 = vmatprep.subr.mxu0 0.0
  %1719 = vmatpush1.msra.mxu0 0.0
  %1720 = vmatprep.subr.mxu0 0.0
  %1721 = vmatpush1.msra.mxu0 0.0
  %1722 = vmatprep.subr.mxu0 0.0
  %1723 = vmatpush1.msra.mxu0 0.0
  %1724 = vmatprep.subr.mxu0 0.0
  %1725 = vmatpush1.msra.mxu0 0.0
  %1726 = vmatprep.subr.mxu0 0.0
  %1727 = vmatpush1.msra.mxu0 0.0
  %1728 = vmatprep.subr.mxu0 0.0
  %1729 = vmatpush1.msra.mxu0 0.0
  %1730 = vmatprep.subr.mxu0 0.0
  %1731 = vmatpush1.msra.mxu0 0.0
  %1732 = vmatprep.subr.mxu0 0.0
  %1733 = vmatpush1.msra.mxu0 0.0
  %1734 = vmatprep.subr.mxu0 0.0
  %1735 = vmatpush1.msra.mxu0 0.0
  %1736 = vmatprep.subr.mxu0 0.0
  %1737 = vmatpush1.msra.mxu0 0.0
  %1738 = vmatprep.subr.mxu0 0.0
  %1739 = vmatpush1.msra.mxu0 0.0
  %1740 = vmatprep.subr.mxu0 0.0
  %1741 = vmatpush1.msra.mxu0 0.0
  %1742 = vmatprep.subr.mxu0 0.0
  %1743 = vmatpush1.msra.mxu0 0.0
  %1744 = vmatprep.subr.mxu0 0.0
  %1745 = vmatpush1.msra.mxu0 0.0
  %1746 = vmatprep.mubr.f32.mxu0 0.0
  %1747 = vmatmul.mubr.f32.gmra.mrb[0].mxu0 %v1649
  %v1748 = vpop.f32.mrb[0].mxu0
  %v1749 = vadd.f32 0.0, %v1748
  %v1750 = vpop.f32.mrb[0].mxu0
  %1751 = vdwg.mxu0
  %1752 = vmatprep.subr.mxu0 0.0
  %1753 = vmatpush1.msra.mxu0 %v1650
  %1754 = vmatprep.subr.mxu0 0.0
  %1755 = vmatpush1.msra.mxu0 %v1651
  %1756 = vmatprep.subr.mxu0 0.0
  %1757 = vmatpush1.msra.mxu0 %v1652
  %1758 = vmatprep.subr.mxu0 0.0
  %1759 = vmatpush1.msra.mxu0 %v1653
  %1760 = vmatprep.subr.mxu0 0.0
  %1761 = vmatpush1.msra.mxu0 %v1654
  %1762 = vmatprep.subr.mxu0 0.0
  %1763 = vmatpush1.msra.mxu0 %v1655
  %1764 = vmatprep.subr.mxu0 0.0
  %1765 = vmatpush1.msra.mxu0 %v1656
  %1766 = vmatprep.subr.mxu0 0.0
  %1767 = vmatpush1.msra.mxu0 %v1657
  %1768 = vmatprep.subr.mxu0 0.0
  %1769 = vmatpush1.msra.mxu0 %v1658
  %1770 = vmatprep.subr.mxu0 0.0
  %1771 = vmatpush1.msra.mxu0 %v1659
  %1772 = vmatprep.subr.mxu0 0.0
  %1773 = vmatpush1.msra.mxu0 %v1660
  %1774 = vmatprep.subr.mxu0 0.0
  %1775 = vmatpush1.msra.mxu0 %v1661
  %1776 = vmatprep.subr.mxu0 0.0
  %1777 = vmatpush1.msra.mxu0 %v1662
  %1778 = vmatprep.subr.mxu0 0.0
  %1779 = vmatpush1.msra.mxu0 %v1663
  %1780 = vmatprep.subr.mxu0 0.0
  %1781 = vmatpush1.msra.mxu0 %v1664
  %1782 = vmatprep.subr.mxu0 0.0
  %1783 = vmatpush1.msra.mxu0 %v1665
  %1784 = vmatprep.subr.mxu0 0.0
  %1785 = vmatpush1.msra.mxu0 0.0
  %1786 = vmatprep.subr.mxu0 0.0
  %1787 = vmatpush1.msra.mxu0 0.0
  %1788 = vmatprep.subr.mxu0 0.0
  %1789 = vmatpush1.msra.mxu0 0.0
  %1790 = vmatprep.subr.mxu0 0.0
  %1791 = vmatpush1.msra.mxu0 0.0
  %1792 = vmatprep.subr.mxu0 0.0
  %1793 = vmatpush1.msra.mxu0 0.0
  %1794 = vmatprep.subr.mxu0 0.0
  %1795 = vmatpush1.msra.mxu0 0.0
  %1796 = vmatprep.subr.mxu0 0.0
  %1797 = vmatpush1.msra.mxu0 0.0
  %1798 = vmatprep.subr.mxu0 0.0
  %1799 = vmatpush1.msra.mxu0 0.0
  %1800 = vmatprep.subr.mxu0 0.0
  %1801 = vmatpush1.msra.mxu0 0.0
  %1802 = vmatprep.subr.mxu0 0.0
  %1803 = vmatpush1.msra.mxu0 0.0
  %1804 = vmatprep.subr.mxu0 0.0
  %1805 = vmatpush1.msra.mxu0 0.0
  %1806 = vmatprep.subr.mxu0 0.0
  %1807 = vmatpush1.msra.mxu0 0.0
  %1808 = vmatprep.subr.mxu0 0.0
  %1809 = vmatpush1.msra.mxu0 0.0
  %1810 = vmatprep.subr.mxu0 0.0
  %1811 = vmatpush1.msra.mxu0 0.0
  %1812 = vmatprep.subr.mxu0 0.0
  %1813 = vmatpush1.msra.mxu0 0.0
  %1814 = vmatprep.subr.mxu0 0.0
  %1815 = vmatpush1.msra.mxu0 0.0
  %1816 = vmatprep.mubr.f32.mxu0 0.0
  %1817 = vmatmul.mubr.f32.gmra.mrb[0].mxu0 %v1569
  %v1818 = vpop.f32.mrb[0].mxu0
  %v1819 = vadd.f32 %v1749, %v1818
  %v1820 = vpop.f32.mrb[0].mxu0
  %1821 = vdwg.mxu0
  %v1822 = vld [vmem:[%s12] sm:$0x1]
  %v1824 = vlaneseq
  %v1825 = vshrl.u32 %v1824, 7
  %v1826 = vsub.s32 0, %v1825
  %v1827 = vrot.slane %v1822, %v1826
  %v1829 = vadd.f32 %v1819, %v1827
  %v1830 = vld [vmem:[%s13] sm:$0xff]
  %v1831 = vld [vmem:[%s13 + $0x8] sm:$0xff]
  %v1832 = vld [vmem:[%s13 + $0x10] sm:$0xff]
  %v1833 = vld [vmem:[%s13 + $0x18] sm:$0xff]
  %v1834 = vld [vmem:[%s13 + $0x20] sm:$0xff]
  %v1835 = vld [vmem:[%s13 + $0x28] sm:$0xff]
  %v1836 = vld [vmem:[%s13 + $0x30] sm:$0xff]
  %v1837 = vld [vmem:[%s13 + $0x38] sm:$0xff]
  %v1838 = vld [vmem:[%s13 + $0x40] sm:$0xff]
  %v1839 = vld [vmem:[%s13 + $0x48] sm:$0xff]
  %v1840 = vld [vmem:[%s13 + $0x50] sm:$0xff]
  %v1841 = vld [vmem:[%s13 + $0x58] sm:$0xff]
  %v1842 = vld [vmem:[%s13 + $0x60] sm:$0xff]
  %v1843 = vld [vmem:[%s13 + $0x68] sm:$0xff]
  %v1844 = vld [vmem:[%s13 + $0x70] sm:$0xff]
  %v1845 = vld [vmem:[%s13 + $0x78] sm:$0xff]
  %v1846 = vld [vmem:[#allocation3] sm:$0x1]
  %v1848 = vlaneseq
  %v1849 = vshrl.u32 %v1848, 7
  %v1850 = vsub.s32 0, %v1849
  %v1851 = vrot.slane %v1846, %v1850
  %1853 = vmatprep.subr.mxu0 0.0
  %1854 = vmatpush1.msra.mxu0 %v1830
  %1855 = vmatprep.subr.mxu0 0.0
  %1856 = vmatpush1.msra.mxu0 %v1831
  %1857 = vmatprep.subr.mxu0 0.0
  %1858 = vmatpush1.msra.mxu0 %v1832
  %1859 = vmatprep.subr.mxu0 0.0
  %1860 = vmatpush1.msra.mxu0 %v1833
  %1861 = vmatprep.subr.mxu0 0.0
  %1862 = vmatpush1.msra.mxu0 %v1834
  %1863 = vmatprep.subr.mxu0 0.0
  %1864 = vmatpush1.msra.mxu0 %v1835
  %1865 = vmatprep.subr.mxu0 0.0
  %1866 = vmatpush1.msra.mxu0 %v1836
  %1867 = vmatprep.subr.mxu0 0.0
  %1868 = vmatpush1.msra.mxu0 %v1837
  %1869 = vmatprep.subr.mxu0 0.0
  %1870 = vmatpush1.msra.mxu0 %v1838
  %1871 = vmatprep.subr.mxu0 0.0
  %1872 = vmatpush1.msra.mxu0 %v1839
  %1873 = vmatprep.subr.mxu0 0.0
  %1874 = vmatpush1.msra.mxu0 %v1840
  %1875 = vmatprep.subr.mxu0 0.0
  %1876 = vmatpush1.msra.mxu0 %v1841
  %1877 = vmatprep.subr.mxu0 0.0
  %1878 = vmatpush1.msra.mxu0 %v1842
  %1879 = vmatprep.subr.mxu0 0.0
  %1880 = vmatpush1.msra.mxu0 %v1843
  %1881 = vmatprep.subr.mxu0 0.0
  %1882 = vmatpush1.msra.mxu0 %v1844
  %1883 = vmatprep.subr.mxu0 0.0
  %1884 = vmatpush1.msra.mxu0 %v1845
  %1885 = vmatprep.subr.mxu0 0.0
  %1886 = vmatpush1.msra.mxu0 0.0
  %1887 = vmatprep.subr.mxu0 0.0
  %1888 = vmatpush1.msra.mxu0 0.0
  %1889 = vmatprep.subr.mxu0 0.0
  %1890 = vmatpush1.msra.mxu0 0.0
  %1891 = vmatprep.subr.mxu0 0.0
  %1892 = vmatpush1.msra.mxu0 0.0
  %1893 = vmatprep.subr.mxu0 0.0
  %1894 = vmatpush1.msra.mxu0 0.0
  %1895 = vmatprep.subr.mxu0 0.0
  %1896 = vmatpush1.msra.mxu0 0.0
  %1897 = vmatprep.subr.mxu0 0.0
  %1898 = vmatpush1.msra.mxu0 0.0
  %1899 = vmatprep.subr.mxu0 0.0
  %1900 = vmatpush1.msra.mxu0 0.0
  %1901 = vmatprep.subr.mxu0 0.0
  %1902 = vmatpush1.msra.mxu0 0.0
  %1903 = vmatprep.subr.mxu0 0.0
  %1904 = vmatpush1.msra.mxu0 0.0
  %1905 = vmatprep.subr.mxu0 0.0
  %1906 = vmatpush1.msra.mxu0 0.0
  %1907 = vmatprep.subr.mxu0 0.0
  %1908 = vmatpush1.msra.mxu0 0.0
  %1909 = vmatprep.subr.mxu0 0.0
  %1910 = vmatpush1.msra.mxu0 0.0
  %1911 = vmatprep.subr.mxu0 0.0
  %1912 = vmatpush1.msra.mxu0 0.0
  %1913 = vmatprep.subr.mxu0 0.0
  %1914 = vmatpush1.msra.mxu0 0.0
  %1915 = vmatprep.subr.mxu0 0.0
  %1916 = vmatpush1.msra.mxu0 0.0
  %1917 = vmatprep.mubr.f32.mxu0 0.0
  %1918 = vmatmul.mubr.f32.gmra.mrb[0].mxu0 %v1829
  %v1919 = vpop.f32.mrb[0].mxu0
  %v1920 = vadd.f32 %v1851, %v1919
  %v1921 = vpop.f32.mrb[0].mxu0
  %1922 = vdwg.mxu0
  %vm1923 = vcmask 1024
  %1924 = vst.msk [vmem:[%s15] sm:$0x3] %vm1923, %v1920
  // Predicated region
  $region62: #{graph_transformer_predictor.1} parent=0 // pred_check
    _
  $region63: #{graph_transformer_predictor.1} parent=0 // pred_check_branch
    %1926 = sbr.rel (0) target = $region65
  $region64: #{graph_transformer_predictor.1} parent=0 // pred_region
    _
  $region65: #{graph_transformer_predictor.1} parent=0 // pred_fallthru
    _
  // Predicated region
  $region66: #{graph_transformer_predictor.1} parent=0 // pred_check
    _
  $region67: #{graph_transformer_predictor.1} parent=0 // pred_check_branch
    %1928 = sbr.rel (0) target = $region69
  $region68: #{graph_transformer_predictor.1} parent=0 // pred_region
    _
  $region69: #{graph_transformer_predictor.1} parent=0 // pred_fallthru
    _

</llo_original>
